<compile_context>
chip_gen: v7x
topology: tpu7x:2x2x1
jax: 0.10.0
libtpu: 0.0.40
codegen_flags: <defaults>
</compile_context>

<pallas_src>
import functools

import jax
import jax.numpy as jnp
from jax import lax
from jax.experimental import pallas as pl
from jax.experimental.pallas import tpu as pltpu

_BN_EPS = 1e-5
_LANE = 128            # channel padding / lane width
_TK = 512              # K tile width when K must be tiled
_K_SINGLE_MAX = 2048   # largest K handled as one untiled block


# ------------------------- single-K-block kernels (1-D grid) -------------------------

def _mm_bias_kernel_1b(x_ref, w_ref, bias_ref, o_ref, *, relu):
    """o = [relu]((x @ w) + bias), full K in one block."""
    y = jnp.dot(x_ref[...], w_ref[...], preferred_element_type=jnp.float32)
    y = y + bias_ref[...]
    if relu:
        y = jnp.maximum(y, 0.0)
    o_ref[...] = y.astype(o_ref.dtype)


def _mm_bias_res_kernel_1b(x_ref, w_ref, bias_ref, res_ref, o_ref):
    """o = relu((x @ w) + bias + res) — identity skip fused, full K in one block."""
    y = jnp.dot(x_ref[...], w_ref[...], preferred_element_type=jnp.float32)
    y = y + bias_ref[...] + res_ref[...].astype(jnp.float32)
    o_ref[...] = jnp.maximum(y, 0.0).astype(o_ref.dtype)


def _mm_bias_proj_kernel_1b(x_ref, w_ref, bias_ref, xs_ref, ws_ref, o_ref):
    """o = relu((x @ w) + (xs @ ws) + bias) — 1x1 projection skip fused, full K."""
    y = jnp.dot(x_ref[...], w_ref[...], preferred_element_type=jnp.float32)
    y = y + jnp.dot(xs_ref[...], ws_ref[...], preferred_element_type=jnp.float32)
    o_ref[...] = jnp.maximum(y + bias_ref[...], 0.0).astype(o_ref.dtype)


# --------------------------- K-tiled kernels (2-D grid) ------------------------------

def _mm_bias_kernel(x_ref, w_ref, bias_ref, o_ref, acc_ref, *, relu):
    """o = [relu]((x @ w) + bias), accumulated over the K grid axis."""
    k = pl.program_id(1)

    @pl.when(k == 0)
    def _():
        acc_ref[...] = jnp.zeros_like(acc_ref)

    acc_ref[...] += jnp.dot(x_ref[...], w_ref[...],
                            preferred_element_type=jnp.float32)

    @pl.when(k == pl.num_programs(1) - 1)
    def _():
        y = acc_ref[...] + bias_ref[...]
        if relu:
            y = jnp.maximum(y, 0.0)
        o_ref[...] = y.astype(o_ref.dtype)


def _mm_bias_res_kernel(x_ref, w_ref, bias_ref, res_ref, o_ref, acc_ref):
    """o = relu((x @ w) + bias + res) — identity skip fused."""
    k = pl.program_id(1)

    @pl.when(k == 0)
    def _():
        acc_ref[...] = res_ref[...].astype(jnp.float32)

    acc_ref[...] += jnp.dot(x_ref[...], w_ref[...],
                            preferred_element_type=jnp.float32)

    @pl.when(k == pl.num_programs(1) - 1)
    def _():
        o_ref[...] = jnp.maximum(acc_ref[...] + bias_ref[...], 0.0).astype(o_ref.dtype)


def _mm_bias_proj_kernel(x_ref, w_ref, bias_ref, xs_ref, ws_ref, o_ref, acc_ref):
    """o = relu((x @ w) + (xs @ ws) + bias) — 1x1 projection skip fused."""
    k = pl.program_id(1)

    @pl.when(k == 0)
    def _():
        acc_ref[...] = jnp.dot(xs_ref[...], ws_ref[...],
                               preferred_element_type=jnp.float32)

    acc_ref[...] += jnp.dot(x_ref[...], w_ref[...],
                            preferred_element_type=jnp.float32)

    @pl.when(k == pl.num_programs(1) - 1)
    def _():
        o_ref[...] = jnp.maximum(acc_ref[...] + bias_ref[...], 0.0).astype(o_ref.dtype)


# ------------------------------ pallas_call wrapper ----------------------------------

def _round_up(v, m):
    return (v + m - 1) // m * m


def _tiled_matmul(x, w, bias, *, relu, out_dtype, tm, res=None, skip=None):
    """(Mp, Kp) @ (Kp, Cp) with fused bias/residual/projection/ReLU epilogue."""
    mp, kp = x.shape
    cp = w.shape[1]
    assert mp % tm == 0 and kp % _LANE == 0 and cp % _LANE == 0

    single_k = kp <= _K_SINGLE_MAX
    if not single_k:
        kpp = _round_up(kp, _TK)
        if kpp != kp:
            x = jnp.pad(x, ((0, 0), (0, kpp - kp)))
            w = jnp.pad(w, ((0, kpp - kp), (0, 0)))
            kp = kpp

    flops = 2 * mp * kp * cp
    bytes_accessed = (x.size * x.dtype.itemsize + w.size * w.dtype.itemsize +
                      bias.size * bias.dtype.itemsize +
                      mp * cp * jnp.dtype(out_dtype).itemsize)

    if single_k:
        grid = (mp // tm,)
        in_specs = [
            pl.BlockSpec((tm, kp), lambda i: (i, 0)),     # activations
            pl.BlockSpec((kp, cp), lambda i: (0, 0)),     # weights (DMA'd once)
            pl.BlockSpec((1, cp), lambda i: (0, 0)),      # bias
        ]
        args = [x, w, bias]
        scratch = []
        if res is not None:
            kernel = _mm_bias_res_kernel_1b
            in_specs.append(pl.BlockSpec((tm, cp), lambda i: (i, 0)))
            args.append(res)
            bytes_accessed += res.size * res.dtype.itemsize
        elif skip is not None:
            xs, ws = skip
            cs = ws.shape[0]
            kernel = _mm_bias_proj_kernel_1b
            in_specs += [pl.BlockSpec((tm, cs), lambda i: (i, 0)),
                         pl.BlockSpec((cs, cp), lambda i: (0, 0))]
            args += [xs, ws]
            flops += 2 * mp * cs * cp
            bytes_accessed += xs.size * xs.dtype.itemsize + ws.size * ws.dtype.itemsize
        else:
            kernel = functools.partial(_mm_bias_kernel_1b, relu=relu)
        out_specs = pl.BlockSpec((tm, cp), lambda i: (i, 0))
        dims = ("parallel",)
    else:
        grid = (mp // tm, kp // _TK)
        in_specs = [
            pl.BlockSpec((tm, _TK), lambda i, k: (i, k)),   # activations
            pl.BlockSpec((_TK, cp), lambda i, k: (k, 0)),   # weights
            pl.BlockSpec((1, cp), lambda i, k: (0, 0)),     # bias
        ]
        args = [x, w, bias]
        scratch = [pltpu.VMEM((tm, cp), jnp.float32)]
        if res is not None:
            kernel = _mm_bias_res_kernel
            in_specs.append(pl.BlockSpec((tm, cp), lambda i, k: (i, 0)))
            args.append(res)
            bytes_accessed += res.size * res.dtype.itemsize
        elif skip is not None:
            xs, ws = skip
            cs = ws.shape[0]
            kernel = _mm_bias_proj_kernel
            in_specs += [pl.BlockSpec((tm, cs), lambda i, k: (i, 0)),
                         pl.BlockSpec((cs, cp), lambda i, k: (0, 0))]
            args += [xs, ws]
            flops += 2 * mp * cs * cp
            bytes_accessed += xs.size * xs.dtype.itemsize + ws.size * ws.dtype.itemsize
        else:
            kernel = functools.partial(_mm_bias_kernel, relu=relu)
        out_specs = pl.BlockSpec((tm, cp), lambda i, k: (i, 0))
        dims = ("parallel", "arbitrary")

    return pl.pallas_call(
        kernel,
        out_shape=jax.ShapeDtypeStruct((mp, cp), out_dtype),
        grid_spec=pltpu.PrefetchScalarGridSpec(
            num_scalar_prefetch=0,
            grid=grid,
            in_specs=in_specs,
            out_specs=out_specs,
            scratch_shapes=scratch,
        ),
        compiler_params=pltpu.CompilerParams(
            dimension_semantics=dims,
            vmem_limit_bytes=32 * 1024 * 1024,
        ),
        cost_estimate=pl.CostEstimate(
            flops=flops, transcendentals=0, bytes_accessed=bytes_accessed),
    )(*args)


# ----------------------------------- JAX glue ----------------------------------------

def _im2col_3x3(x_pad, ho, wo, stride):
    """x_pad: (N, H+2, W+2, C) -> (N*ho*wo, 9*C) with (ky, kx, c) patch ordering."""
    n, _, _, c = x_pad.shape
    cols = []
    for ky in range(3):
        for kx in range(3):
            sl = x_pad[:,
                       ky:ky + stride * (ho - 1) + 1:stride,
                       kx:kx + stride * (wo - 1) + 1:stride,
                       :]
            cols.append(sl)
    patches = jnp.concatenate(cols, axis=-1)           # (N, ho, wo, 9*C)
    return patches.reshape(n * ho * wo, 9 * c)


def _fold_bn(gamma, beta, mean, var):
    scale = gamma / jnp.sqrt(var + _BN_EPS)
    bias = beta - mean * scale
    return scale, bias


def _conv_weight_matrix(w_oihw, cin_p, cout_p, scale):
    """(O, I, kh, kw) -> (kh*kw*cin_p, cout_p) with the BN scale folded into columns."""
    o, i, kh, kw = w_oihw.shape
    w = jnp.transpose(w_oihw, (2, 3, 1, 0))                           # (kh, kw, I, O)
    w = jnp.pad(w, ((0, 0), (0, 0), (0, cin_p - i), (0, cout_p - o)))
    w = w * jnp.pad(scale, (0, cout_p - o))[None, None, None, :]
    return w.reshape(kh * kw * cin_p, cout_p)


def residual_block_forward(x_nchw, params, stride):
    n, cin, h, w = x_nchw.shape
    cout = params["w1"].shape[0]
    ho = (h + 2 - 3) // stride + 1
    wo = (w + 2 - 3) // stride + 1
    m = n * ho * wo

    cin_p = _round_up(cin, _LANE)
    cout_p = _round_up(cout, _LANE)
    tm = 512 if m >= 512 else _round_up(m, 8)   # modest enough for v7x's 64 MiB VMEM
    mp = _round_up(m, tm)

    x = jnp.transpose(x_nchw, (0, 2, 3, 1))                           # NHWC f32

    # One channel-padded, spatially-padded bf16 copy feeds conv1 patches AND the skip path.
    xp = jnp.pad(x, ((0, 0), (1, 1), (1, 1), (0, cin_p - cin))).astype(jnp.bfloat16)

    # ---- conv1 (+bn1 folded into weights) + relu ----
    s1, b1 = _fold_bn(*params["bn1"])
    w1m = _conv_weight_matrix(params["w1"], cin_p, cout_p, s1).astype(jnp.bfloat16)
    b1p = jnp.pad(b1, (0, cout_p - cout)).reshape(1, cout_p).astype(jnp.float32)

    p1 = _im2col_3x3(xp, ho, wo, stride)                              # (m, 9*cin_p) bf16
    p1 = jnp.pad(p1, ((0, mp - m), (0, 0)))

    # conv1 writes bf16 in the channel-padded layout conv2 consumes directly.
    out1 = _tiled_matmul(p1, w1m, b1p, relu=True, out_dtype=jnp.bfloat16, tm=tm)

    # ---- conv2 (+bn2 folded) + skip + residual-add + relu, all fused in one kernel ----
    s2, b2 = _fold_bn(*params["bn2"])
    w2m = _conv_weight_matrix(params["w2"], cout_p, cout_p, s2).astype(jnp.bfloat16)
    b2p = jnp.pad(b2, (0, cout_p - cout))

    o1p = jnp.pad(out1[:m].reshape(n, ho, wo, cout_p),
                  ((0, 0), (1, 1), (1, 1), (0, 0)))
    p2 = _im2col_3x3(o1p, ho, wo, 1)                                  # (m, 9*cout_p) bf16
    p2 = jnp.pad(p2, ((0, mp - m), (0, 0)))

    if stride != 1 or cin != cout:
        # Projection skip: 1x1-conv matmul fused into the conv2 kernel.
        ss, bs = _fold_bn(*params["bns"])
        wsm = _conv_weight_matrix(params["ws"], cin_p, cout_p, ss).astype(jnp.bfloat16)
        bias_comb = (b2p + jnp.pad(bs, (0, cout_p - cout))
                     ).reshape(1, cout_p).astype(jnp.float32)
        xs = xp[:, 1:h + 1, 1:w + 1, :][:, ::stride, ::stride, :][:, :ho, :wo, :]
        xs = jnp.pad(xs.reshape(m, cin_p), ((0, mp - m), (0, 0)))
        out = _tiled_matmul(p2, w2m, bias_comb, relu=True, out_dtype=jnp.float32,
                            tm=tm, skip=(xs, wsm))
    else:
        # Identity skip: residual added in f32 inside the kernel.
        bias2 = b2p.reshape(1, cout_p).astype(jnp.float32)
        res = jnp.pad(x, ((0, 0), (0, 0), (0, 0), (0, cout_p - cin))).reshape(m, cout_p)
        res = jnp.pad(res, ((0, mp - m), (0, 0))).astype(jnp.float32)
        out = _tiled_matmul(p2, w2m, bias2, relu=True, out_dtype=jnp.float32,
                            tm=tm, res=res)

    out = out[:m, :cout].reshape(n, ho, wo, cout)
    return jnp.transpose(out, (0, 3, 1, 2))                          # back to NCHW


# --------------------------- reference & param init ----------------------------------

def _reference_forward(x_nchw, params, stride):
    """Pure-JAX (XLA conv) reference with identical eval-mode BN semantics."""
    def conv(x, wt, s, p):
        return lax.conv_general_dilated(
            x, wt, (s, s), [(p, p), (p, p)],
            dimension_numbers=("NCHW", "OIHW", "NCHW"))

    def bn(x, bnp):
        g, b, m, v = bnp
        scale = g / jnp.sqrt(v + _BN_EPS)
        bias = b - m * scale
        return x * scale[None, :, None, None] + bias[None, :, None, None]

    cin = x_nchw.shape[1]
    cout = params["w1"].shape[0]
    if stride != 1 or cin != cout:
        identity = bn(conv(x_nchw, params["ws"], stride, 0), params["bns"])
    else:
        identity = x_nchw
    out = jax.nn.relu(bn(conv(x_nchw, params["w1"], stride, 1), params["bn1"]))
    out = bn(conv(out, params["w2"], 1, 1), params["bn2"]) + identity
    return jax.nn.relu(out)


def init_params(key, cin, cout, stride):
    ks = jax.random.split(key, 16)

    def bn_params(k0, k1, k2, k3, c):
        gamma = 0.5 + jax.random.uniform(k0, (c,), jnp.float32)
        beta = 0.1 * jax.random.normal(k1, (c,), jnp.float32)
        mean = 0.1 * jax.random.normal(k2, (c,), jnp.float32)
        var = 0.5 + jax.random.uniform(k3, (c,), jnp.float32)
        return (gamma, beta, mean, var)

    params = {
        "w1": 0.1 * jax.random.normal(ks[0], (cout, cin, 3, 3), jnp.float32),
        "w2": 0.1 * jax.random.normal(ks[1], (cout, cout, 3, 3), jnp.float32),
        "bn1": bn_params(ks[2], ks[3], ks[4], ks[5], cout),
        "bn2": bn_params(ks[6], ks[7], ks[8], ks[9], cout),
    }
    if stride != 1 or cin != cout:
        params["ws"] = 0.1 * jax.random.normal(ks[10], (cout, cin, 1, 1), jnp.float32)
        params["bns"] = bn_params(ks[11], ks[12], ks[13], ks[14], cout)
    return params


# -------------------------------------- main ------------------------------------------

if __name__ == "__main__":
    key = jax.random.PRNGKey(0)
    k_x, k_p = jax.random.split(key)

    batch, in_channels, out_channels, hw, stride = 2, 4, 8, 16, 2
    x = jax.random.normal(k_x, (batch, in_channels, hw, hw), jnp.float32)
    params = init_params(k_p, in_channels, out_channels, stride)

    out = jax.block_until_ready(residual_block_forward(x, params, stride))
    ref = jax.block_until_ready(_reference_forward(x, params, stride))

    assert out.shape == ref.shape, (out.shape, ref.shape)
    err = float(jnp.max(jnp.abs(out - ref)))
    # bf16 MXU operands vs f32 XLA reference -> loose-but-meaningful tolerance.
    assert jnp.allclose(out, ref, atol=3e-2, rtol=3e-2), err

    print("KERNEL_OK")
</pallas_src>

<mosaic_0001>
module attributes {stable_mosaic.version = 11 : i64} {
  func.func @_mm_bias_kernel_1b(%arg0: i32, %arg1: memref<128x1152xbf16, #tpu.memory_space<vmem>>, %arg2: memref<1152x128xbf16, #tpu.memory_space<vmem>>, %arg3: memref<1x128xf32, #tpu.memory_space<vmem>>, %arg4: memref<128x128xbf16, #tpu.memory_space<vmem>>) attributes {dimension_semantics = [#tpu.dimension_semantics<parallel>], iteration_bounds = array<i64: 1>, scalar_prefetch = 0 : i64, scratch_operands = 0 : i64, tpu.core_type = #tpu.core_type<tc>, window_params = [{transform_indices = @transform_0, window_bounds = array<i64: 128, 1152>}, {pipeline_mode = #tpu.pipeline_mode<synchronous>, transform_indices = @transform_1, window_bounds = array<i64: 1152, 128>}, {pipeline_mode = #tpu.pipeline_mode<synchronous>, transform_indices = @transform_2, window_bounds = array<i64: 1, 128>}, {transform_indices = @transform_3, window_bounds = array<i64: 128, 128>}]} {
    %c0 = arith.constant 0 : index
    %c0_0 = arith.constant 0 : index
    %0 = vector.load %arg1[%c0, %c0_0] : memref<128x1152xbf16, #tpu.memory_space<vmem>>, vector<128x1152xbf16>
    %c0_1 = arith.constant 0 : index
    %c0_2 = arith.constant 0 : index
    %1 = vector.load %arg2[%c0_1, %c0_2] : memref<1152x128xbf16, #tpu.memory_space<vmem>>, vector<1152x128xbf16>
    %cst = arith.constant dense<0.000000e+00> : vector<128x128xf32>
    %2 = tpu.matmul %0, %1, %cst {dimension_numbers = #tpu.dot_dimension_numbers<[1], [0], [0], [1], [0, 0, 1, 1], [], []>} : vector<128x1152xbf16>, vector<1152x128xbf16>, vector<128x128xf32> -> vector<128x128xf32>
    %c0_3 = arith.constant 0 : index
    %c0_4 = arith.constant 0 : index
    %3 = vector.load %arg3[%c0_3, %c0_4] : memref<1x128xf32, #tpu.memory_space<vmem>>, vector<1x128xf32>
    %4 = vector.broadcast %3 : vector<1x128xf32> to vector<128x128xf32>
    %5 = arith.addf %2, %4 : vector<128x128xf32>
    %cst_5 = arith.constant 0.000000e+00 : f32
    %6 = vector.broadcast %cst_5 : f32 to vector<128x128xf32>
    %7 = arith.maximumf %5, %6 : vector<128x128xf32>
    %8 = arith.truncf %7 : vector<128x128xf32> to vector<128x128xbf16>
    %c0_6 = arith.constant 0 : index
    %c0_7 = arith.constant 0 : index
    %9 = vector.load %arg4[%c0_6, %c0_7] : memref<128x128xbf16, #tpu.memory_space<vmem>>, vector<128x128xbf16>
    tpu.vector_store %arg4[%c0_6, %c0_7], %8 {strides = array<i32>} : memref<128x128xbf16, #tpu.memory_space<vmem>>, vector<128x128xbf16>,
    return
  }
  func.func @transform_0(%arg0: i32) -> (i32, i32) {
    %c0_i32 = arith.constant 0 : i32
    %c0_i32_0 = arith.constant 0 : i32
    return %arg0, %c0_i32 : i32, i32
  }
  func.func @transform_1(%arg0: i32) -> (i32, i32) {
    %c0_i32 = arith.constant 0 : i32
    %c0_i32_0 = arith.constant 0 : i32
    %c0_i32_1 = arith.constant 0 : i32
    return %c0_i32, %c0_i32_0 : i32, i32
  }
  func.func @transform_2(%arg0: i32) -> (i32, i32) {
    %c0_i32 = arith.constant 0 : i32
    %c0_i32_0 = arith.constant 0 : i32
    %c0_i32_1 = arith.constant 0 : i32
    return %c0_i32, %c0_i32_0 : i32, i32
  }
  func.func @transform_3(%arg0: i32) -> (i32, i32) {
    %c0_i32 = arith.constant 0 : i32
    %c0_i32_0 = arith.constant 0 : i32
    return %arg0, %c0_i32 : i32, i32
  }
}

</mosaic_0001>

<llo_original>
// kernel: tpu_custom_call.1
$region0: #{tpu_custom_call.1}
  #allocation0 [shape = 'u32[]', space=smem, size = 0x4, offset = 0x4, fixed_abs, tag = 'smem constant byte address 0x4 - core index']
  #allocation1 [shape = 'u32[144,128]{1,0:T(1,128)}', space=vmem, size = 0x12000, scoped, tag = 'internal scratch']
  %s0 = inlined_call_operand.hbm [shape: bf16[128,1152], index: 0, kind: input, shape index: {}]
  %s1 = inlined_call_operand.hbm [shape: bf16[1152,128], index: 1, kind: input, shape index: {}]
  %s2 = inlined_call_operand.vmem [shape: f32[1,128], index: 2, kind: input, shape index: {}]
  %s3 = inlined_call_operand.hbm [shape: bf16[128,128], index: 3, kind: output, shape index: {}]
  %s4 = sld [smem:[#allocation0]]
  $region30: #{tpu_custom_call.1} parent=0
    _
  %s6 = ssub.s32 1, %s4
  %s7 = scalar_select 0, %s6, %s4
  $region1: #{tpu_custom_call.1} parent=0
    #allocation2 [shape = 'u8[294912]{0}', space=vmem, size = 0x48000, scoped, tag = 'input window, operand 0, single buffered']
    #allocation3 [shape = 's32[1]{0}', space=sflag, size = 0x4, scoped, tag = 'scoped memory for tpu_custom_call.1']
    #allocation4 [shape = 's32[1]{0}', space=sflag, size = 0x4, scoped, tag = 'scoped memory for tpu_custom_call.1']
    #allocation5 [shape = 'u8[294912]{0}', space=vmem, size = 0x48000, scoped, tag = 'input window, operand 1, single buffered']
    #allocation6 [shape = 's32[1]{0}', space=sflag, size = 0x4, scoped, tag = 'scoped memory for tpu_custom_call.1']
    #allocation7 [shape = 'u8[32768]{0}', space=vmem, size = 0x8000, scoped, tag = 'output window, operand 0, single buffered']
    %8 = vsyncpa [#allocation3], 0
    %9 = vsyncpa [#allocation6], 0
    %10 = vsyncpa [#allocation4], 0
    // Predicated region
    $region2: #{tpu_custom_call.1} parent=1 // pred_check
      _
    $region3: #{tpu_custom_call.1} parent=1 // pred_check_branch
      %12 = sbr.rel (0) target = $region5
    $region4: #{tpu_custom_call.1} parent=1 // pred_region
      %s14 = ssub.s32 9216, 9216
      %15 = vsyncadd [#allocation3], %s14
      %s16 = sshll.u32 [#allocation2], 4
      %s17 = int_to_ptr.vmem [resolvable:$true] %s16
      %22 = dma.hbm_to_vmem [thread:$0]  %s0, 9216, %s17, [#allocation3], 576, 576, 36
    $region5: #{tpu_custom_call.1} parent=1 // pred_fallthru
      _
    // Predicated region
    $region6: #{tpu_custom_call.1} parent=1 // pred_check
      _
    $region7: #{tpu_custom_call.1} parent=1 // pred_check_branch
      %24 = sbr.rel (0) target = $region9
    $region8: #{tpu_custom_call.1} parent=1 // pred_region
      %s26 = ssub.s32 9216, 9216
      %27 = vsyncadd [#allocation6], %s26
      %s28 = sshll.u32 [#allocation5], 4
      %s29 = int_to_ptr.vmem [resolvable:$true] %s28
      %34 = dma.hbm_to_vmem [thread:$0]  %s1, 9216, %s29, [#allocation6], 64, 64, 4
    $region9: #{tpu_custom_call.1} parent=1 // pred_fallthru
      _
    // Predicated region
    $region10: #{tpu_custom_call.1} parent=1 // pred_check
      _
    $region11: #{tpu_custom_call.1} parent=1 // pred_check_branch
      %36 = sbr.rel (0) target = $region13
    $region12: #{tpu_custom_call.1} parent=1 // pred_region
      _
    $region13: #{tpu_custom_call.1} parent=1 // pred_fallthru
      _
    // Predicated region
    $region14: #{tpu_custom_call.1} parent=1 // pred_check
      _
    $region15: #{tpu_custom_call.1} parent=1 // pred_check_branch
      %38 = sbr.rel (0) target = $region17
    $region16: #{tpu_custom_call.1} parent=1 // pred_region
      %39 = dma.done [#allocation3], 9216
    $region17: #{tpu_custom_call.1} parent=1 // pred_fallthru
      _
    // Predicated region
    $region18: #{tpu_custom_call.1} parent=1 // pred_check
      _
    $region19: #{tpu_custom_call.1} parent=1 // pred_check_branch
      %41 = sbr.rel (0) target = $region21
    $region20: #{tpu_custom_call.1} parent=1 // pred_region
      %42 = dma.done [#allocation6], 9216
    $region21: #{tpu_custom_call.1} parent=1 // pred_fallthru
      _
    %v44 = vld [vmem:[#allocation2] sm:$0xff]
    %v45 = vld [vmem:[#allocation2 + $0x8] sm:$0xff]
    %v46 = vld [vmem:[#allocation2 + $0x10] sm:$0xff]
    %v47 = vld [vmem:[#allocation2 + $0x18] sm:$0xff]
    %v48 = vld [vmem:[#allocation2 + $0x20] sm:$0xf]
    %v49 = vld [vmem:[#allocation2 + $0x24] sm:$0xff]
    %v50 = vld [vmem:[#allocation2 + $0x2c] sm:$0xff]
    %v51 = vld [vmem:[#allocation2 + $0x34] sm:$0xff]
    %v52 = vld [vmem:[#allocation2 + $0x3c] sm:$0xff]
    %v53 = vld [vmem:[#allocation2 + $0x44] sm:$0xf]
    %v54 = vld [vmem:[#allocation2 + $0x48] sm:$0xff]
    %v55 = vld [vmem:[#allocation2 + $0x50] sm:$0xff]
    %v56 = vld [vmem:[#allocation2 + $0x58] sm:$0xff]
    %v57 = vld [vmem:[#allocation2 + $0x60] sm:$0xff]
    %v58 = vld [vmem:[#allocation2 + $0x68] sm:$0xf]
    %v59 = vld [vmem:[#allocation2 + $0x6c] sm:$0xff]
    %v60 = vld [vmem:[#allocation2 + $0x74] sm:$0xff]
    %v61 = vld [vmem:[#allocation2 + $0x7c] sm:$0xff]
    %v62 = vld [vmem:[#allocation2 + $0x84] sm:$0xff]
    %v63 = vld [vmem:[#allocation2 + $0x8c] sm:$0xf]
    %v64 = vld [vmem:[#allocation2 + $0x90] sm:$0xff]
    %v65 = vld [vmem:[#allocation2 + $0x98] sm:$0xff]
    %v66 = vld [vmem:[#allocation2 + $0xa0] sm:$0xff]
    %v67 = vld [vmem:[#allocation2 + $0xa8] sm:$0xff]
    %v68 = vld [vmem:[#allocation2 + $0xb0] sm:$0xf]
    %v69 = vld [vmem:[#allocation2 + $0xb4] sm:$0xff]
    %v70 = vld [vmem:[#allocation2 + $0xbc] sm:$0xff]
    %v71 = vld [vmem:[#allocation2 + $0xc4] sm:$0xff]
    %v72 = vld [vmem:[#allocation2 + $0xcc] sm:$0xff]
    %v73 = vld [vmem:[#allocation2 + $0xd4] sm:$0xf]
    %v74 = vld [vmem:[#allocation2 + $0xd8] sm:$0xff]
    %v75 = vld [vmem:[#allocation2 + $0xe0] sm:$0xff]
    %v76 = vld [vmem:[#allocation2 + $0xe8] sm:$0xff]
    %v77 = vld [vmem:[#allocation2 + $0xf0] sm:$0xff]
    %v78 = vld [vmem:[#allocation2 + $0xf8] sm:$0xf]
    %v79 = vld [vmem:[#allocation2 + $0xfc] sm:$0xff]
    %v80 = vld [vmem:[#allocation2 + $0x104] sm:$0xff]
    %v81 = vld [vmem:[#allocation2 + $0x10c] sm:$0xff]
    %v82 = vld [vmem:[#allocation2 + $0x114] sm:$0xff]
    %v83 = vld [vmem:[#allocation2 + $0x11c] sm:$0xf]
    %v84 = vld [vmem:[#allocation2 + $0x120] sm:$0xff]
    %v85 = vld [vmem:[#allocation2 + $0x128] sm:$0xff]
    %v86 = vld [vmem:[#allocation2 + $0x130] sm:$0xff]
    %v87 = vld [vmem:[#allocation2 + $0x138] sm:$0xff]
    %v88 = vld [vmem:[#allocation2 + $0x140] sm:$0xf]
    %v89 = vld [vmem:[#allocation2 + $0x144] sm:$0xff]
    %v90 = vld [vmem:[#allocation2 + $0x14c] sm:$0xff]
    %v91 = vld [vmem:[#allocation2 + $0x154] sm:$0xff]
    %v92 = vld [vmem:[#allocation2 + $0x15c] sm:$0xff]
    %v93 = vld [vmem:[#allocation2 + $0x164] sm:$0xf]
    %v94 = vld [vmem:[#allocation2 + $0x168] sm:$0xff]
    %v95 = vld [vmem:[#allocation2 + $0x170] sm:$0xff]
    %v96 = vld [vmem:[#allocation2 + $0x178] sm:$0xff]
    %v97 = vld [vmem:[#allocation2 + $0x180] sm:$0xff]
    %v98 = vld [vmem:[#allocation2 + $0x188] sm:$0xf]
    %v99 = vld [vmem:[#allocation2 + $0x18c] sm:$0xff]
    %v100 = vld [vmem:[#allocation2 + $0x194] sm:$0xff]
    %v101 = vld [vmem:[#allocation2 + $0x19c] sm:$0xff]
    %v102 = vld [vmem:[#allocation2 + $0x1a4] sm:$0xff]
    %v103 = vld [vmem:[#allocation2 + $0x1ac] sm:$0xf]
    %v104 = vld [vmem:[#allocation2 + $0x1b0] sm:$0xff]
    %v105 = vld [vmem:[#allocation2 + $0x1b8] sm:$0xff]
    %v106 = vld [vmem:[#allocation2 + $0x1c0] sm:$0xff]
    %v107 = vld [vmem:[#allocation2 + $0x1c8] sm:$0xff]
    %v108 = vld [vmem:[#allocation2 + $0x1d0] sm:$0xf]
    %v109 = vld [vmem:[#allocation2 + $0x1d4] sm:$0xff]
    %v110 = vld [vmem:[#allocation2 + $0x1dc] sm:$0xff]
    %v111 = vld [vmem:[#allocation2 + $0x1e4] sm:$0xff]
    %v112 = vld [vmem:[#allocation2 + $0x1ec] sm:$0xff]
    %v113 = vld [vmem:[#allocation2 + $0x1f4] sm:$0xf]
    %v114 = vld [vmem:[#allocation2 + $0x1f8] sm:$0xff]
    %v115 = vld [vmem:[#allocation2 + $0x200] sm:$0xff]
    %v116 = vld [vmem:[#allocation2 + $0x208] sm:$0xff]
    %v117 = vld [vmem:[#allocation2 + $0x210] sm:$0xff]
    %v118 = vld [vmem:[#allocation2 + $0x218] sm:$0xf]
    %v119 = vld [vmem:[#allocation2 + $0x21c] sm:$0xff]
    %v120 = vld [vmem:[#allocation2 + $0x224] sm:$0xff]
    %v121 = vld [vmem:[#allocation2 + $0x22c] sm:$0xff]
    %v122 = vld [vmem:[#allocation2 + $0x234] sm:$0xff]
    %v123 = vld [vmem:[#allocation2 + $0x23c] sm:$0xf]
    %v124 = vld [vmem:[#allocation5] sm:$0xf]
    %v125 = vld [vmem:[#allocation5 + $0x4] sm:$0xf]
    %v126 = vld [vmem:[#allocation5 + $0x8] sm:$0xf]
    %v127 = vld [vmem:[#allocation5 + $0xc] sm:$0xf]
    %v128 = vld [vmem:[#allocation5 + $0x10] sm:$0xf]
    %v129 = vld [vmem:[#allocation5 + $0x14] sm:$0xf]
    %v130 = vld [vmem:[#allocation5 + $0x18] sm:$0xf]
    %v131 = vld [vmem:[#allocation5 + $0x1c] sm:$0xf]
    %v132 = vld [vmem:[#allocation5 + $0x20] sm:$0xf]
    %v133 = vld [vmem:[#allocation5 + $0x24] sm:$0xf]
    %v134 = vld [vmem:[#allocation5 + $0x28] sm:$0xf]
    %v135 = vld [vmem:[#allocation5 + $0x2c] sm:$0xf]
    %v136 = vld [vmem:[#allocation5 + $0x30] sm:$0xf]
    %v137 = vld [vmem:[#allocation5 + $0x34] sm:$0xf]
    %v138 = vld [vmem:[#allocation5 + $0x38] sm:$0xf]
    %v139 = vld [vmem:[#allocation5 + $0x3c] sm:$0xf]
    %v140 = vld [vmem:[#allocation5 + $0x40] sm:$0xf]
    %v141 = vld [vmem:[#allocation5 + $0x44] sm:$0xf]
    %v142 = vld [vmem:[#allocation5 + $0x48] sm:$0xf]
    %v143 = vld [vmem:[#allocation5 + $0x4c] sm:$0xf]
    %v144 = vld [vmem:[#allocation5 + $0x50] sm:$0xf]
    %v145 = vld [vmem:[#allocation5 + $0x54] sm:$0xf]
    %v146 = vld [vmem:[#allocation5 + $0x58] sm:$0xf]
    %v147 = vld [vmem:[#allocation5 + $0x5c] sm:$0xf]
    %v148 = vld [vmem:[#allocation5 + $0x60] sm:$0xf]
    %v149 = vld [vmem:[#allocation5 + $0x64] sm:$0xf]
    %v150 = vld [vmem:[#allocation5 + $0x68] sm:$0xf]
    %v151 = vld [vmem:[#allocation5 + $0x6c] sm:$0xf]
    %v152 = vld [vmem:[#allocation5 + $0x70] sm:$0xf]
    %v153 = vld [vmem:[#allocation5 + $0x74] sm:$0xf]
    %v154 = vld [vmem:[#allocation5 + $0x78] sm:$0xf]
    %v155 = vld [vmem:[#allocation5 + $0x7c] sm:$0xf]
    %v156 = vld [vmem:[#allocation5 + $0x80] sm:$0xf]
    %v157 = vld [vmem:[#allocation5 + $0x84] sm:$0xf]
    %v158 = vld [vmem:[#allocation5 + $0x88] sm:$0xf]
    %v159 = vld [vmem:[#allocation5 + $0x8c] sm:$0xf]
    %v160 = vld [vmem:[#allocation5 + $0x90] sm:$0xf]
    %v161 = vld [vmem:[#allocation5 + $0x94] sm:$0xf]
    %v162 = vld [vmem:[#allocation5 + $0x98] sm:$0xf]
    %v163 = vld [vmem:[#allocation5 + $0x9c] sm:$0xf]
    %v164 = vld [vmem:[#allocation5 + $0xa0] sm:$0xf]
    %v165 = vld [vmem:[#allocation5 + $0xa4] sm:$0xf]
    %v166 = vld [vmem:[#allocation5 + $0xa8] sm:$0xf]
    %v167 = vld [vmem:[#allocation5 + $0xac] sm:$0xf]
    %v168 = vld [vmem:[#allocation5 + $0xb0] sm:$0xf]
    %v169 = vld [vmem:[#allocation5 + $0xb4] sm:$0xf]
    %v170 = vld [vmem:[#allocation5 + $0xb8] sm:$0xf]
    %v171 = vld [vmem:[#allocation5 + $0xbc] sm:$0xf]
    %v172 = vld [vmem:[#allocation5 + $0xc0] sm:$0xf]
    %v173 = vld [vmem:[#allocation5 + $0xc4] sm:$0xf]
    %v174 = vld [vmem:[#allocation5 + $0xc8] sm:$0xf]
    %v175 = vld [vmem:[#allocation5 + $0xcc] sm:$0xf]
    %v176 = vld [vmem:[#allocation5 + $0xd0] sm:$0xf]
    %v177 = vld [vmem:[#allocation5 + $0xd4] sm:$0xf]
    %v178 = vld [vmem:[#allocation5 + $0xd8] sm:$0xf]
    %v179 = vld [vmem:[#allocation5 + $0xdc] sm:$0xf]
    %v180 = vld [vmem:[#allocation5 + $0xe0] sm:$0xf]
    %v181 = vld [vmem:[#allocation5 + $0xe4] sm:$0xf]
    %v182 = vld [vmem:[#allocation5 + $0xe8] sm:$0xf]
    %v183 = vld [vmem:[#allocation5 + $0xec] sm:$0xf]
    %v184 = vld [vmem:[#allocation5 + $0xf0] sm:$0xf]
    %v185 = vld [vmem:[#allocation5 + $0xf4] sm:$0xf]
    %v186 = vld [vmem:[#allocation5 + $0xf8] sm:$0xf]
    %v187 = vld [vmem:[#allocation5 + $0xfc] sm:$0xf]
    %v188 = vld [vmem:[#allocation5 + $0x100] sm:$0xf]
    %v189 = vld [vmem:[#allocation5 + $0x104] sm:$0xf]
    %v190 = vld [vmem:[#allocation5 + $0x108] sm:$0xf]
    %v191 = vld [vmem:[#allocation5 + $0x10c] sm:$0xf]
    %v192 = vld [vmem:[#allocation5 + $0x110] sm:$0xf]
    %v193 = vld [vmem:[#allocation5 + $0x114] sm:$0xf]
    %v194 = vld [vmem:[#allocation5 + $0x118] sm:$0xf]
    %v195 = vld [vmem:[#allocation5 + $0x11c] sm:$0xf]
    %v196 = vld [vmem:[#allocation5 + $0x120] sm:$0xf]
    %v197 = vld [vmem:[#allocation5 + $0x124] sm:$0xf]
    %v198 = vld [vmem:[#allocation5 + $0x128] sm:$0xf]
    %v199 = vld [vmem:[#allocation5 + $0x12c] sm:$0xf]
    %v200 = vld [vmem:[#allocation5 + $0x130] sm:$0xf]
    %v201 = vld [vmem:[#allocation5 + $0x134] sm:$0xf]
    %v202 = vld [vmem:[#allocation5 + $0x138] sm:$0xf]
    %v203 = vld [vmem:[#allocation5 + $0x13c] sm:$0xf]
    %v204 = vld [vmem:[#allocation5 + $0x140] sm:$0xf]
    %v205 = vld [vmem:[#allocation5 + $0x144] sm:$0xf]
    %v206 = vld [vmem:[#allocation5 + $0x148] sm:$0xf]
    %v207 = vld [vmem:[#allocation5 + $0x14c] sm:$0xf]
    %v208 = vld [vmem:[#allocation5 + $0x150] sm:$0xf]
    %v209 = vld [vmem:[#allocation5 + $0x154] sm:$0xf]
    %v210 = vld [vmem:[#allocation5 + $0x158] sm:$0xf]
    %v211 = vld [vmem:[#allocation5 + $0x15c] sm:$0xf]
    %v212 = vld [vmem:[#allocation5 + $0x160] sm:$0xf]
    %v213 = vld [vmem:[#allocation5 + $0x164] sm:$0xf]
    %v214 = vld [vmem:[#allocation5 + $0x168] sm:$0xf]
    %v215 = vld [vmem:[#allocation5 + $0x16c] sm:$0xf]
    %v216 = vld [vmem:[#allocation5 + $0x170] sm:$0xf]
    %v217 = vld [vmem:[#allocation5 + $0x174] sm:$0xf]
    %v218 = vld [vmem:[#allocation5 + $0x178] sm:$0xf]
    %v219 = vld [vmem:[#allocation5 + $0x17c] sm:$0xf]
    %v220 = vld [vmem:[#allocation5 + $0x180] sm:$0xf]
    %v221 = vld [vmem:[#allocation5 + $0x184] sm:$0xf]
    %v222 = vld [vmem:[#allocation5 + $0x188] sm:$0xf]
    %v223 = vld [vmem:[#allocation5 + $0x18c] sm:$0xf]
    %v224 = vld [vmem:[#allocation5 + $0x190] sm:$0xf]
    %v225 = vld [vmem:[#allocation5 + $0x194] sm:$0xf]
    %v226 = vld [vmem:[#allocation5 + $0x198] sm:$0xf]
    %v227 = vld [vmem:[#allocation5 + $0x19c] sm:$0xf]
    %v228 = vld [vmem:[#allocation5 + $0x1a0] sm:$0xf]
    %v229 = vld [vmem:[#allocation5 + $0x1a4] sm:$0xf]
    %v230 = vld [vmem:[#allocation5 + $0x1a8] sm:$0xf]
    %v231 = vld [vmem:[#allocation5 + $0x1ac] sm:$0xf]
    %v232 = vld [vmem:[#allocation5 + $0x1b0] sm:$0xf]
    %v233 = vld [vmem:[#allocation5 + $0x1b4] sm:$0xf]
    %v234 = vld [vmem:[#allocation5 + $0x1b8] sm:$0xf]
    %v235 = vld [vmem:[#allocation5 + $0x1bc] sm:$0xf]
    %v236 = vld [vmem:[#allocation5 + $0x1c0] sm:$0xf]
    %v237 = vld [vmem:[#allocation5 + $0x1c4] sm:$0xf]
    %v238 = vld [vmem:[#allocation5 + $0x1c8] sm:$0xf]
    %v239 = vld [vmem:[#allocation5 + $0x1cc] sm:$0xf]
    %v240 = vld [vmem:[#allocation5 + $0x1d0] sm:$0xf]
    %v241 = vld [vmem:[#allocation5 + $0x1d4] sm:$0xf]
    %v242 = vld [vmem:[#allocation5 + $0x1d8] sm:$0xf]
    %v243 = vld [vmem:[#allocation5 + $0x1dc] sm:$0xf]
    %v244 = vld [vmem:[#allocation5 + $0x1e0] sm:$0xf]
    %v245 = vld [vmem:[#allocation5 + $0x1e4] sm:$0xf]
    %v246 = vld [vmem:[#allocation5 + $0x1e8] sm:$0xf]
    %v247 = vld [vmem:[#allocation5 + $0x1ec] sm:$0xf]
    %v248 = vld [vmem:[#allocation5 + $0x1f0] sm:$0xf]
    %v249 = vld [vmem:[#allocation5 + $0x1f4] sm:$0xf]
    %v250 = vld [vmem:[#allocation5 + $0x1f8] sm:$0xf]
    %v251 = vld [vmem:[#allocation5 + $0x1fc] sm:$0xf]
    %v252 = vld [vmem:[#allocation5 + $0x200] sm:$0xf]
    %v253 = vld [vmem:[#allocation5 + $0x204] sm:$0xf]
    %v254 = vld [vmem:[#allocation5 + $0x208] sm:$0xf]
    %v255 = vld [vmem:[#allocation5 + $0x20c] sm:$0xf]
    %v256 = vld [vmem:[#allocation5 + $0x210] sm:$0xf]
    %v257 = vld [vmem:[#allocation5 + $0x214] sm:$0xf]
    %v258 = vld [vmem:[#allocation5 + $0x218] sm:$0xf]
    %v259 = vld [vmem:[#allocation5 + $0x21c] sm:$0xf]
    %v260 = vld [vmem:[#allocation5 + $0x220] sm:$0xf]
    %v261 = vld [vmem:[#allocation5 + $0x224] sm:$0xf]
    %v262 = vld [vmem:[#allocation5 + $0x228] sm:$0xf]
    %v263 = vld [vmem:[#allocation5 + $0x22c] sm:$0xf]
    %v264 = vld [vmem:[#allocation5 + $0x230] sm:$0xf]
    %v265 = vld [vmem:[#allocation5 + $0x234] sm:$0xf]
    %v266 = vld [vmem:[#allocation5 + $0x238] sm:$0xf]
    %v267 = vld [vmem:[#allocation5 + $0x23c] sm:$0xf]
    %v268 = vld [vmem:[%s2] sm:$0x1]
    %v270 = vlaneseq
    %v271 = vshrl.u32 %v270, 7
    %v272 = vsub.s32 0, %v271
    %v273 = vrot.slane %v268, %v272
    %v355 = vunpack.c.l.b16 %v44
    %v356 = vunpack.c.h.b16 %v44
    %v357 = vunpack.c.l.b16 %v45
    %v358 = vunpack.c.h.b16 %v45
    %v359 = vunpack.c.l.b16 %v46
    %v360 = vunpack.c.h.b16 %v46
    %v361 = vunpack.c.l.b16 %v47
    %v362 = vunpack.c.h.b16 %v47
    %v363 = vunpack.c.l.b16 %v48
    %v364 = vunpack.c.l.b16 %v49
    %v365 = vunpack.c.h.b16 %v49
    %v366 = vunpack.c.l.b16 %v50
    %v367 = vunpack.c.h.b16 %v50
    %v368 = vunpack.c.l.b16 %v51
    %v369 = vunpack.c.h.b16 %v51
    %v370 = vunpack.c.l.b16 %v52
    %v371 = vunpack.c.h.b16 %v52
    %v372 = vunpack.c.l.b16 %v53
    %v373 = vunpack.c.l.b16 %v54
    %v374 = vunpack.c.h.b16 %v54
    %v375 = vunpack.c.l.b16 %v55
    %v376 = vunpack.c.h.b16 %v55
    %v377 = vunpack.c.l.b16 %v56
    %v378 = vunpack.c.h.b16 %v56
    %v379 = vunpack.c.l.b16 %v57
    %v380 = vunpack.c.h.b16 %v57
    %v381 = vunpack.c.l.b16 %v58
    %v382 = vunpack.c.l.b16 %v59
    %v383 = vunpack.c.h.b16 %v59
    %v384 = vunpack.c.l.b16 %v60
    %v385 = vunpack.c.h.b16 %v60
    %v386 = vunpack.c.l.b16 %v61
    %v387 = vunpack.c.h.b16 %v61
    %v388 = vunpack.c.l.b16 %v62
    %v389 = vunpack.c.h.b16 %v62
    %v390 = vunpack.c.l.b16 %v63
    %v391 = vunpack.c.l.b16 %v64
    %v392 = vunpack.c.h.b16 %v64
    %v393 = vunpack.c.l.b16 %v65
    %v394 = vunpack.c.h.b16 %v65
    %v395 = vunpack.c.l.b16 %v66
    %v396 = vunpack.c.h.b16 %v66
    %v397 = vunpack.c.l.b16 %v67
    %v398 = vunpack.c.h.b16 %v67
    %v399 = vunpack.c.l.b16 %v68
    %v400 = vunpack.c.l.b16 %v69
    %v401 = vunpack.c.h.b16 %v69
    %v402 = vunpack.c.l.b16 %v70
    %v403 = vunpack.c.h.b16 %v70
    %v404 = vunpack.c.l.b16 %v71
    %v405 = vunpack.c.h.b16 %v71
    %v406 = vunpack.c.l.b16 %v72
    %v407 = vunpack.c.h.b16 %v72
    %v408 = vunpack.c.l.b16 %v73
    %v409 = vunpack.c.l.b16 %v74
    %v410 = vunpack.c.h.b16 %v74
    %v411 = vunpack.c.l.b16 %v75
    %v412 = vunpack.c.h.b16 %v75
    %v413 = vunpack.c.l.b16 %v76
    %v414 = vunpack.c.h.b16 %v76
    %v415 = vunpack.c.l.b16 %v77
    %v416 = vunpack.c.h.b16 %v77
    %v417 = vunpack.c.l.b16 %v78
    %v418 = vunpack.c.l.b16 %v79
    %v419 = vunpack.c.h.b16 %v79
    %v420 = vunpack.c.l.b16 %v80
    %v421 = vunpack.c.h.b16 %v80
    %v422 = vunpack.c.l.b16 %v81
    %v423 = vunpack.c.h.b16 %v81
    %v424 = vunpack.c.l.b16 %v82
    %v425 = vunpack.c.h.b16 %v82
    %v426 = vunpack.c.l.b16 %v83
    %v427 = vunpack.c.l.b16 %v84
    %v428 = vunpack.c.h.b16 %v84
    %v429 = vunpack.c.l.b16 %v85
    %v430 = vunpack.c.h.b16 %v85
    %v431 = vunpack.c.l.b16 %v86
    %v432 = vunpack.c.h.b16 %v86
    %v433 = vunpack.c.l.b16 %v87
    %v434 = vunpack.c.h.b16 %v87
    %v435 = vunpack.c.l.b16 %v88
    %v436 = vunpack.c.l.b16 %v89
    %v437 = vunpack.c.h.b16 %v89
    %v438 = vunpack.c.l.b16 %v90
    %v439 = vunpack.c.h.b16 %v90
    %v440 = vunpack.c.l.b16 %v91
    %v441 = vunpack.c.h.b16 %v91
    %v442 = vunpack.c.l.b16 %v92
    %v443 = vunpack.c.h.b16 %v92
    %v444 = vunpack.c.l.b16 %v93
    %v445 = vunpack.c.l.b16 %v94
    %v446 = vunpack.c.h.b16 %v94
    %v447 = vunpack.c.l.b16 %v95
    %v448 = vunpack.c.h.b16 %v95
    %v449 = vunpack.c.l.b16 %v96
    %v450 = vunpack.c.h.b16 %v96
    %v451 = vunpack.c.l.b16 %v97
    %v452 = vunpack.c.h.b16 %v97
    %v453 = vunpack.c.l.b16 %v98
    %v454 = vunpack.c.l.b16 %v99
    %v455 = vunpack.c.h.b16 %v99
    %v456 = vunpack.c.l.b16 %v100
    %v457 = vunpack.c.h.b16 %v100
    %v458 = vunpack.c.l.b16 %v101
    %v459 = vunpack.c.h.b16 %v101
    %v460 = vunpack.c.l.b16 %v102
    %v461 = vunpack.c.h.b16 %v102
    %v462 = vunpack.c.l.b16 %v103
    %v463 = vunpack.c.l.b16 %v104
    %v464 = vunpack.c.h.b16 %v104
    %v465 = vunpack.c.l.b16 %v105
    %v466 = vunpack.c.h.b16 %v105
    %v467 = vunpack.c.l.b16 %v106
    %v468 = vunpack.c.h.b16 %v106
    %v469 = vunpack.c.l.b16 %v107
    %v470 = vunpack.c.h.b16 %v107
    %v471 = vunpack.c.l.b16 %v108
    %v472 = vunpack.c.l.b16 %v109
    %v473 = vunpack.c.h.b16 %v109
    %v474 = vunpack.c.l.b16 %v110
    %v475 = vunpack.c.h.b16 %v110
    %v476 = vunpack.c.l.b16 %v111
    %v477 = vunpack.c.h.b16 %v111
    %v478 = vunpack.c.l.b16 %v112
    %v479 = vunpack.c.h.b16 %v112
    %v480 = vunpack.c.l.b16 %v113
    %v481 = vunpack.c.l.b16 %v114
    %v482 = vunpack.c.h.b16 %v114
    %v483 = vunpack.c.l.b16 %v115
    %v484 = vunpack.c.h.b16 %v115
    %v485 = vunpack.c.l.b16 %v116
    %v486 = vunpack.c.h.b16 %v116
    %v487 = vunpack.c.l.b16 %v117
    %v488 = vunpack.c.h.b16 %v117
    %v489 = vunpack.c.l.b16 %v118
    %v490 = vunpack.c.l.b16 %v119
    %v491 = vunpack.c.h.b16 %v119
    %v492 = vunpack.c.l.b16 %v120
    %v493 = vunpack.c.h.b16 %v120
    %v494 = vunpack.c.l.b16 %v121
    %v495 = vunpack.c.h.b16 %v121
    %v496 = vunpack.c.l.b16 %v122
    %v497 = vunpack.c.h.b16 %v122
    %v498 = vunpack.c.l.b16 %v123
    %v499 = vpack.c.b16 %v364, %v355
    %v500 = vpack.c.b16 %v365, %v356
    %v501 = vpack.c.b16 %v366, %v357
    %v502 = vpack.c.b16 %v367, %v358
    %v503 = vpack.c.b16 %v368, %v359
    %v504 = vpack.c.b16 %v369, %v360
    %v505 = vpack.c.b16 %v370, %v361
    %v506 = vpack.c.b16 %v371, %v362
    %v507 = vpack.c.b16 %v372, %v363
    %v508 = vpack.c.b16 %v382, %v373
    %v509 = vpack.c.b16 %v383, %v374
    %v510 = vpack.c.b16 %v384, %v375
    %v511 = vpack.c.b16 %v385, %v376
    %v512 = vpack.c.b16 %v386, %v377
    %v513 = vpack.c.b16 %v387, %v378
    %v514 = vpack.c.b16 %v388, %v379
    %v515 = vpack.c.b16 %v389, %v380
    %v516 = vpack.c.b16 %v390, %v381
    %v517 = vpack.c.b16 %v400, %v391
    %v518 = vpack.c.b16 %v401, %v392
    %v519 = vpack.c.b16 %v402, %v393
    %v520 = vpack.c.b16 %v403, %v394
    %v521 = vpack.c.b16 %v404, %v395
    %v522 = vpack.c.b16 %v405, %v396
    %v523 = vpack.c.b16 %v406, %v397
    %v524 = vpack.c.b16 %v407, %v398
    %v525 = vpack.c.b16 %v408, %v399
    %v526 = vpack.c.b16 %v418, %v409
    %v527 = vpack.c.b16 %v419, %v410
    %v528 = vpack.c.b16 %v420, %v411
    %v529 = vpack.c.b16 %v421, %v412
    %v530 = vpack.c.b16 %v422, %v413
    %v531 = vpack.c.b16 %v423, %v414
    %v532 = vpack.c.b16 %v424, %v415
    %v533 = vpack.c.b16 %v425, %v416
    %v534 = vpack.c.b16 %v426, %v417
    %v535 = vpack.c.b16 %v436, %v427
    %v536 = vpack.c.b16 %v437, %v428
    %v537 = vpack.c.b16 %v438, %v429
    %v538 = vpack.c.b16 %v439, %v430
    %v539 = vpack.c.b16 %v440, %v431
    %v540 = vpack.c.b16 %v441, %v432
    %v541 = vpack.c.b16 %v442, %v433
    %v542 = vpack.c.b16 %v443, %v434
    %v543 = vpack.c.b16 %v444, %v435
    %v544 = vpack.c.b16 %v454, %v445
    %v545 = vpack.c.b16 %v455, %v446
    %v546 = vpack.c.b16 %v456, %v447
    %v547 = vpack.c.b16 %v457, %v448
    %v548 = vpack.c.b16 %v458, %v449
    %v549 = vpack.c.b16 %v459, %v450
    %v550 = vpack.c.b16 %v460, %v451
    %v551 = vpack.c.b16 %v461, %v452
    %v552 = vpack.c.b16 %v462, %v453
    %v553 = vpack.c.b16 %v472, %v463
    %v554 = vpack.c.b16 %v473, %v464
    %v555 = vpack.c.b16 %v474, %v465
    %v556 = vpack.c.b16 %v475, %v466
    %v557 = vpack.c.b16 %v476, %v467
    %v558 = vpack.c.b16 %v477, %v468
    %v559 = vpack.c.b16 %v478, %v469
    %v560 = vpack.c.b16 %v479, %v470
    %v561 = vpack.c.b16 %v480, %v471
    %v562 = vpack.c.b16 %v490, %v481
    %v563 = vpack.c.b16 %v491, %v482
    %v564 = vpack.c.b16 %v492, %v483
    %v565 = vpack.c.b16 %v493, %v484
    %v566 = vpack.c.b16 %v494, %v485
    %v567 = vpack.c.b16 %v495, %v486
    %v568 = vpack.c.b16 %v496, %v487
    %v569 = vpack.c.b16 %v497, %v488
    %v570 = vpack.c.b16 %v498, %v489
    %v787 = vunpack.c.l.b16 %v124
    %v788 = vunpack.c.l.b16 %v125
    %v789 = vunpack.c.l.b16 %v126
    %v790 = vunpack.c.l.b16 %v127
    %v791 = vunpack.c.l.b16 %v128
    %v792 = vunpack.c.l.b16 %v129
    %v793 = vunpack.c.l.b16 %v130
    %v794 = vunpack.c.l.b16 %v131
    %v795 = vunpack.c.l.b16 %v132
    %v796 = vunpack.c.l.b16 %v133
    %v797 = vunpack.c.l.b16 %v134
    %v798 = vunpack.c.l.b16 %v135
    %v799 = vunpack.c.l.b16 %v136
    %v800 = vunpack.c.l.b16 %v137
    %v801 = vunpack.c.l.b16 %v138
    %v802 = vunpack.c.l.b16 %v139
    %v803 = vunpack.c.l.b16 %v140
    %v804 = vunpack.c.l.b16 %v141
    %v805 = vunpack.c.l.b16 %v142
    %v806 = vunpack.c.l.b16 %v143
    %v807 = vunpack.c.l.b16 %v144
    %v808 = vunpack.c.l.b16 %v145
    %v809 = vunpack.c.l.b16 %v146
    %v810 = vunpack.c.l.b16 %v147
    %v811 = vunpack.c.l.b16 %v148
    %v812 = vunpack.c.l.b16 %v149
    %v813 = vunpack.c.l.b16 %v150
    %v814 = vunpack.c.l.b16 %v151
    %v815 = vunpack.c.l.b16 %v152
    %v816 = vunpack.c.l.b16 %v153
    %v817 = vunpack.c.l.b16 %v154
    %v818 = vunpack.c.l.b16 %v155
    %v819 = vunpack.c.l.b16 %v156
    %v820 = vunpack.c.l.b16 %v157
    %v821 = vunpack.c.l.b16 %v158
    %v822 = vunpack.c.l.b16 %v159
    %v823 = vunpack.c.l.b16 %v160
    %v824 = vunpack.c.l.b16 %v161
    %v825 = vunpack.c.l.b16 %v162
    %v826 = vunpack.c.l.b16 %v163
    %v827 = vunpack.c.l.b16 %v164
    %v828 = vunpack.c.l.b16 %v165
    %v829 = vunpack.c.l.b16 %v166
    %v830 = vunpack.c.l.b16 %v167
    %v831 = vunpack.c.l.b16 %v168
    %v832 = vunpack.c.l.b16 %v169
    %v833 = vunpack.c.l.b16 %v170
    %v834 = vunpack.c.l.b16 %v171
    %v835 = vunpack.c.l.b16 %v172
    %v836 = vunpack.c.l.b16 %v173
    %v837 = vunpack.c.l.b16 %v174
    %v838 = vunpack.c.l.b16 %v175
    %v839 = vunpack.c.l.b16 %v176
    %v840 = vunpack.c.l.b16 %v177
    %v841 = vunpack.c.l.b16 %v178
    %v842 = vunpack.c.l.b16 %v179
    %v843 = vunpack.c.l.b16 %v180
    %v844 = vunpack.c.l.b16 %v181
    %v845 = vunpack.c.l.b16 %v182
    %v846 = vunpack.c.l.b16 %v183
    %v847 = vunpack.c.l.b16 %v184
    %v848 = vunpack.c.l.b16 %v185
    %v849 = vunpack.c.l.b16 %v186
    %v850 = vunpack.c.l.b16 %v187
    %v851 = vunpack.c.l.b16 %v188
    %v852 = vunpack.c.l.b16 %v189
    %v853 = vunpack.c.l.b16 %v190
    %v854 = vunpack.c.l.b16 %v191
    %v855 = vunpack.c.l.b16 %v192
    %v856 = vunpack.c.l.b16 %v193
    %v857 = vunpack.c.l.b16 %v194
    %v858 = vunpack.c.l.b16 %v195
    %v859 = vunpack.c.l.b16 %v196
    %v860 = vunpack.c.l.b16 %v197
    %v861 = vunpack.c.l.b16 %v198
    %v862 = vunpack.c.l.b16 %v199
    %v863 = vunpack.c.l.b16 %v200
    %v864 = vunpack.c.l.b16 %v201
    %v865 = vunpack.c.l.b16 %v202
    %v866 = vunpack.c.l.b16 %v203
    %v867 = vunpack.c.l.b16 %v204
    %v868 = vunpack.c.l.b16 %v205
    %v869 = vunpack.c.l.b16 %v206
    %v870 = vunpack.c.l.b16 %v207
    %v871 = vunpack.c.l.b16 %v208
    %v872 = vunpack.c.l.b16 %v209
    %v873 = vunpack.c.l.b16 %v210
    %v874 = vunpack.c.l.b16 %v211
    %v875 = vunpack.c.l.b16 %v212
    %v876 = vunpack.c.l.b16 %v213
    %v877 = vunpack.c.l.b16 %v214
    %v878 = vunpack.c.l.b16 %v215
    %v879 = vunpack.c.l.b16 %v216
    %v880 = vunpack.c.l.b16 %v217
    %v881 = vunpack.c.l.b16 %v218
    %v882 = vunpack.c.l.b16 %v219
    %v883 = vunpack.c.l.b16 %v220
    %v884 = vunpack.c.l.b16 %v221
    %v885 = vunpack.c.l.b16 %v222
    %v886 = vunpack.c.l.b16 %v223
    %v887 = vunpack.c.l.b16 %v224
    %v888 = vunpack.c.l.b16 %v225
    %v889 = vunpack.c.l.b16 %v226
    %v890 = vunpack.c.l.b16 %v227
    %v891 = vunpack.c.l.b16 %v228
    %v892 = vunpack.c.l.b16 %v229
    %v893 = vunpack.c.l.b16 %v230
    %v894 = vunpack.c.l.b16 %v231
    %v895 = vunpack.c.l.b16 %v232
    %v896 = vunpack.c.l.b16 %v233
    %v897 = vunpack.c.l.b16 %v234
    %v898 = vunpack.c.l.b16 %v235
    %v899 = vunpack.c.l.b16 %v236
    %v900 = vunpack.c.l.b16 %v237
    %v901 = vunpack.c.l.b16 %v238
    %v902 = vunpack.c.l.b16 %v239
    %v903 = vunpack.c.l.b16 %v240
    %v904 = vunpack.c.l.b16 %v241
    %v905 = vunpack.c.l.b16 %v242
    %v906 = vunpack.c.l.b16 %v243
    %v907 = vunpack.c.l.b16 %v244
    %v908 = vunpack.c.l.b16 %v245
    %v909 = vunpack.c.l.b16 %v246
    %v910 = vunpack.c.l.b16 %v247
    %v911 = vunpack.c.l.b16 %v248
    %v912 = vunpack.c.l.b16 %v249
    %v913 = vunpack.c.l.b16 %v250
    %v914 = vunpack.c.l.b16 %v251
    %v915 = vunpack.c.l.b16 %v252
    %v916 = vunpack.c.l.b16 %v253
    %v917 = vunpack.c.l.b16 %v254
    %v918 = vunpack.c.l.b16 %v255
    %v919 = vunpack.c.l.b16 %v256
    %v920 = vunpack.c.l.b16 %v257
    %v921 = vunpack.c.l.b16 %v258
    %v922 = vunpack.c.l.b16 %v259
    %v923 = vunpack.c.l.b16 %v260
    %v924 = vunpack.c.l.b16 %v261
    %v925 = vunpack.c.l.b16 %v262
    %v926 = vunpack.c.l.b16 %v263
    %v927 = vunpack.c.l.b16 %v264
    %v928 = vunpack.c.l.b16 %v265
    %v929 = vunpack.c.l.b16 %v266
    %v930 = vunpack.c.l.b16 %v267
    %v931 = vpack.c.b16 %v788, %v787
    %v932 = vpack.c.b16 %v790, %v789
    %v933 = vpack.c.b16 %v792, %v791
    %v934 = vpack.c.b16 %v794, %v793
    %v935 = vpack.c.b16 %v796, %v795
    %v936 = vpack.c.b16 %v798, %v797
    %v937 = vpack.c.b16 %v800, %v799
    %v938 = vpack.c.b16 %v802, %v801
    %v939 = vpack.c.b16 %v804, %v803
    %v940 = vpack.c.b16 %v806, %v805
    %v941 = vpack.c.b16 %v808, %v807
    %v942 = vpack.c.b16 %v810, %v809
    %v943 = vpack.c.b16 %v812, %v811
    %v944 = vpack.c.b16 %v814, %v813
    %v945 = vpack.c.b16 %v816, %v815
    %v946 = vpack.c.b16 %v818, %v817
    %v947 = vpack.c.b16 %v820, %v819
    %v948 = vpack.c.b16 %v822, %v821
    %v949 = vpack.c.b16 %v824, %v823
    %v950 = vpack.c.b16 %v826, %v825
    %v951 = vpack.c.b16 %v828, %v827
    %v952 = vpack.c.b16 %v830, %v829
    %v953 = vpack.c.b16 %v832, %v831
    %v954 = vpack.c.b16 %v834, %v833
    %v955 = vpack.c.b16 %v836, %v835
    %v956 = vpack.c.b16 %v838, %v837
    %v957 = vpack.c.b16 %v840, %v839
    %v958 = vpack.c.b16 %v842, %v841
    %v959 = vpack.c.b16 %v844, %v843
    %v960 = vpack.c.b16 %v846, %v845
    %v961 = vpack.c.b16 %v848, %v847
    %v962 = vpack.c.b16 %v850, %v849
    %v963 = vpack.c.b16 %v852, %v851
    %v964 = vpack.c.b16 %v854, %v853
    %v965 = vpack.c.b16 %v856, %v855
    %v966 = vpack.c.b16 %v858, %v857
    %v967 = vpack.c.b16 %v860, %v859
    %v968 = vpack.c.b16 %v862, %v861
    %v969 = vpack.c.b16 %v864, %v863
    %v970 = vpack.c.b16 %v866, %v865
    %v971 = vpack.c.b16 %v868, %v867
    %v972 = vpack.c.b16 %v870, %v869
    %v973 = vpack.c.b16 %v872, %v871
    %v974 = vpack.c.b16 %v874, %v873
    %v975 = vpack.c.b16 %v876, %v875
    %v976 = vpack.c.b16 %v878, %v877
    %v977 = vpack.c.b16 %v880, %v879
    %v978 = vpack.c.b16 %v882, %v881
    %v979 = vpack.c.b16 %v884, %v883
    %v980 = vpack.c.b16 %v886, %v885
    %v981 = vpack.c.b16 %v888, %v887
    %v982 = vpack.c.b16 %v890, %v889
    %v983 = vpack.c.b16 %v892, %v891
    %v984 = vpack.c.b16 %v894, %v893
    %v985 = vpack.c.b16 %v896, %v895
    %v986 = vpack.c.b16 %v898, %v897
    %v987 = vpack.c.b16 %v900, %v899
    %v988 = vpack.c.b16 %v902, %v901
    %v989 = vpack.c.b16 %v904, %v903
    %v990 = vpack.c.b16 %v906, %v905
    %v991 = vpack.c.b16 %v908, %v907
    %v992 = vpack.c.b16 %v910, %v909
    %v993 = vpack.c.b16 %v912, %v911
    %v994 = vpack.c.b16 %v914, %v913
    %v995 = vpack.c.b16 %v916, %v915
    %v996 = vpack.c.b16 %v918, %v917
    %v997 = vpack.c.b16 %v920, %v919
    %v998 = vpack.c.b16 %v922, %v921
    %v999 = vpack.c.b16 %v924, %v923
    %v1000 = vpack.c.b16 %v926, %v925
    %v1001 = vpack.c.b16 %v928, %v927
    %v1002 = vpack.c.b16 %v930, %v929
    %1075 = vmatprep.subr.bf16.mxu0 0
    %1076 = vmatpush1.bf16.msra.mxu0 %v931
    %1077 = vmatprep.subr.bf16.mxu0 0
    %1078 = vmatpush1.bf16.msra.mxu0 %v932
    %1079 = vmatprep.subr.bf16.mxu0 0
    %1080 = vmatpush1.bf16.msra.mxu0 %v933
    %1081 = vmatprep.subr.bf16.mxu0 0
    %1082 = vmatpush1.bf16.msra.mxu0 %v934
    %1083 = vmatprep.subr.bf16.mxu0 0
    %1084 = vmatpush1.bf16.msra.mxu0 %v935
    %1085 = vmatprep.subr.bf16.mxu0 0
    %1086 = vmatpush1.bf16.msra.mxu0 %v936
    %1087 = vmatprep.subr.bf16.mxu0 0
    %1088 = vmatpush1.bf16.msra.mxu0 %v937
    %1089 = vmatprep.subr.bf16.mxu0 0
    %1090 = vmatpush1.bf16.msra.mxu0 %v938
    %1091 = vmatprep.subr.bf16.mxu0 0
    %1092 = vmatpush1.bf16.msra.mxu0 %v939
    %1093 = vmatprep.subr.bf16.mxu0 0
    %1094 = vmatpush1.bf16.msra.mxu0 %v940
    %1095 = vmatprep.subr.bf16.mxu0 0
    %1096 = vmatpush1.bf16.msra.mxu0 %v941
    %1097 = vmatprep.subr.bf16.mxu0 0
    %1098 = vmatpush1.bf16.msra.mxu0 %v942
    %1099 = vmatprep.subr.bf16.mxu0 0
    %1100 = vmatpush1.bf16.msra.mxu0 %v943
    %1101 = vmatprep.subr.bf16.mxu0 0
    %1102 = vmatpush1.bf16.msra.mxu0 %v944
    %1103 = vmatprep.subr.bf16.mxu0 0
    %1104 = vmatpush1.bf16.msra.mxu0 %v945
    %1105 = vmatprep.subr.bf16.mxu0 0
    %1106 = vmatpush1.bf16.msra.mxu0 %v946
    %1107 = vmatprep.mubr.bf16.mxu0 %v500
    %1108 = vmatmul.mubr.bf16.gmra.mrb[0].mxu0 %v499
    %v1109 = vpop.f32.mrb[0].mxu0
    %v1110 = vadd.f32 %v273, %v1109
    %v1111 = vpop.f32.mrb[0].mxu0
    %v1112 = vpop.f32.mrb[0].mxu0
    %v1113 = vadd.f32 %v273, %v1112
    %v1114 = vpop.f32.mrb[0].mxu0
    %1115 = vmatprep.mubr.bf16.mxu0 %v509
    %1116 = vmatmul.mubr.bf16.gmra.mrb[0].mxu0 %v508
    %v1117 = vpop.f32.mrb[0].mxu0
    %v1118 = vadd.f32 %v273, %v1117
    %v1119 = vpop.f32.mrb[0].mxu0
    %v1120 = vpop.f32.mrb[0].mxu0
    %v1121 = vadd.f32 %v273, %v1120
    %v1122 = vpop.f32.mrb[0].mxu0
    %1123 = vmatprep.mubr.bf16.mxu0 %v518
    %1124 = vmatmul.mubr.bf16.gmra.mrb[0].mxu0 %v517
    %v1125 = vpop.f32.mrb[0].mxu0
    %v1126 = vadd.f32 %v273, %v1125
    %v1127 = vpop.f32.mrb[0].mxu0
    %v1128 = vpop.f32.mrb[0].mxu0
    %v1129 = vadd.f32 %v273, %v1128
    %v1130 = vpop.f32.mrb[0].mxu0
    %1131 = vmatprep.mubr.bf16.mxu0 %v527
    %1132 = vmatmul.mubr.bf16.gmra.mrb[0].mxu0 %v526
    %v1133 = vpop.f32.mrb[0].mxu0
    %v1134 = vadd.f32 %v273, %v1133
    %v1135 = vpop.f32.mrb[0].mxu0
    %v1136 = vpop.f32.mrb[0].mxu0
    %v1137 = vadd.f32 %v273, %v1136
    %v1138 = vpop.f32.mrb[0].mxu0
    %1139 = vmatprep.mubr.bf16.mxu0 %v536
    %1140 = vmatmul.mubr.bf16.gmra.mrb[0].mxu0 %v535
    %v1141 = vpop.f32.mrb[0].mxu0
    %v1142 = vadd.f32 %v273, %v1141
    %v1143 = vpop.f32.mrb[0].mxu0
    %v1144 = vpop.f32.mrb[0].mxu0
    %v1145 = vadd.f32 %v273, %v1144
    %v1146 = vpop.f32.mrb[0].mxu0
    %1147 = vmatprep.mubr.bf16.mxu0 %v545
    %1148 = vmatmul.mubr.bf16.gmra.mrb[0].mxu0 %v544
    %v1149 = vpop.f32.mrb[0].mxu0
    %v1150 = vadd.f32 %v273, %v1149
    %v1151 = vpop.f32.mrb[0].mxu0
    %v1152 = vpop.f32.mrb[0].mxu0
    %v1153 = vadd.f32 %v273, %v1152
    %v1154 = vpop.f32.mrb[0].mxu0
    %1155 = vmatprep.mubr.bf16.mxu0 %v554
    %1156 = vmatmul.mubr.bf16.gmra.mrb[0].mxu0 %v553
    %v1157 = vpop.f32.mrb[0].mxu0
    %v1158 = vadd.f32 %v273, %v1157
    %v1159 = vpop.f32.mrb[0].mxu0
    %v1160 = vpop.f32.mrb[0].mxu0
    %v1161 = vadd.f32 %v273, %v1160
    %v1162 = vpop.f32.mrb[0].mxu0
    %1163 = vmatprep.mubr.bf16.mxu0 %v563
    %1164 = vmatmul.mubr.bf16.gmra.mrb[0].mxu0 %v562
    %v1165 = vpop.f32.mrb[0].mxu0
    %v1166 = vadd.f32 %v273, %v1165
    %v1167 = vpop.f32.mrb[0].mxu0
    %v1168 = vpop.f32.mrb[0].mxu0
    %v1169 = vadd.f32 %v273, %v1168
    %v1170 = vpop.f32.mrb[0].mxu0
    %1171 = vdwg.mxu0
    %1172 = vmatprep.subr.bf16.mxu0 0
    %1173 = vmatpush1.bf16.msra.mxu0 %v947
    %1174 = vmatprep.subr.bf16.mxu0 0
    %1175 = vmatpush1.bf16.msra.mxu0 %v948
    %1176 = vmatprep.subr.bf16.mxu0 0
    %1177 = vmatpush1.bf16.msra.mxu0 %v949
    %1178 = vmatprep.subr.bf16.mxu0 0
    %1179 = vmatpush1.bf16.msra.mxu0 %v950
    %1180 = vmatprep.subr.bf16.mxu0 0
    %1181 = vmatpush1.bf16.msra.mxu0 %v951
    %1182 = vmatprep.subr.bf16.mxu0 0
    %1183 = vmatpush1.bf16.msra.mxu0 %v952
    %1184 = vmatprep.subr.bf16.mxu0 0
    %1185 = vmatpush1.bf16.msra.mxu0 %v953
    %1186 = vmatprep.subr.bf16.mxu0 0
    %1187 = vmatpush1.bf16.msra.mxu0 %v954
    %1188 = vmatprep.subr.bf16.mxu0 0
    %1189 = vmatpush1.bf16.msra.mxu0 %v955
    %1190 = vmatprep.subr.bf16.mxu0 0
    %1191 = vmatpush1.bf16.msra.mxu0 %v956
    %1192 = vmatprep.subr.bf16.mxu0 0
    %1193 = vmatpush1.bf16.msra.mxu0 %v957
    %1194 = vmatprep.subr.bf16.mxu0 0
    %1195 = vmatpush1.bf16.msra.mxu0 %v958
    %1196 = vmatprep.subr.bf16.mxu0 0
    %1197 = vmatpush1.bf16.msra.mxu0 %v959
    %1198 = vmatprep.subr.bf16.mxu0 0
    %1199 = vmatpush1.bf16.msra.mxu0 %v960
    %1200 = vmatprep.subr.bf16.mxu0 0
    %1201 = vmatpush1.bf16.msra.mxu0 %v961
    %1202 = vmatprep.subr.bf16.mxu0 0
    %1203 = vmatpush1.bf16.msra.mxu0 %v962
    %1204 = vmatprep.mubr.bf16.mxu0 %v502
    %1205 = vmatmul.mubr.bf16.gmra.mrb[0].mxu0 %v501
    %v1206 = vpop.f32.mrb[0].mxu0
    %v1207 = vadd.f32 %v1110, %v1206
    %v1208 = vpop.f32.mrb[0].mxu0
    %v1209 = vpop.f32.mrb[0].mxu0
    %v1210 = vadd.f32 %v1113, %v1209
    %v1211 = vpop.f32.mrb[0].mxu0
    %1212 = vmatprep.mubr.bf16.mxu0 %v511
    %1213 = vmatmul.mubr.bf16.gmra.mrb[0].mxu0 %v510
    %v1214 = vpop.f32.mrb[0].mxu0
    %v1215 = vadd.f32 %v1118, %v1214
    %v1216 = vpop.f32.mrb[0].mxu0
    %v1217 = vpop.f32.mrb[0].mxu0
    %v1218 = vadd.f32 %v1121, %v1217
    %v1219 = vpop.f32.mrb[0].mxu0
    %1220 = vmatprep.mubr.bf16.mxu0 %v520
    %1221 = vmatmul.mubr.bf16.gmra.mrb[0].mxu0 %v519
    %v1222 = vpop.f32.mrb[0].mxu0
    %v1223 = vadd.f32 %v1126, %v1222
    %v1224 = vpop.f32.mrb[0].mxu0
    %v1225 = vpop.f32.mrb[0].mxu0
    %v1226 = vadd.f32 %v1129, %v1225
    %v1227 = vpop.f32.mrb[0].mxu0
    %1228 = vmatprep.mubr.bf16.mxu0 %v529
    %1229 = vmatmul.mubr.bf16.gmra.mrb[0].mxu0 %v528
    %v1230 = vpop.f32.mrb[0].mxu0
    %v1231 = vadd.f32 %v1134, %v1230
    %v1232 = vpop.f32.mrb[0].mxu0
    %v1233 = vpop.f32.mrb[0].mxu0
    %v1234 = vadd.f32 %v1137, %v1233
    %v1235 = vpop.f32.mrb[0].mxu0
    %1236 = vmatprep.mubr.bf16.mxu0 %v538
    %1237 = vmatmul.mubr.bf16.gmra.mrb[0].mxu0 %v537
    %v1238 = vpop.f32.mrb[0].mxu0
    %v1239 = vadd.f32 %v1142, %v1238
    %v1240 = vpop.f32.mrb[0].mxu0
    %v1241 = vpop.f32.mrb[0].mxu0
    %v1242 = vadd.f32 %v1145, %v1241
    %v1243 = vpop.f32.mrb[0].mxu0
    %1244 = vmatprep.mubr.bf16.mxu0 %v547
    %1245 = vmatmul.mubr.bf16.gmra.mrb[0].mxu0 %v546
    %v1246 = vpop.f32.mrb[0].mxu0
    %v1247 = vadd.f32 %v1150, %v1246
    %v1248 = vpop.f32.mrb[0].mxu0
    %v1249 = vpop.f32.mrb[0].mxu0
    %v1250 = vadd.f32 %v1153, %v1249
    %v1251 = vpop.f32.mrb[0].mxu0
    %1252 = vmatprep.mubr.bf16.mxu0 %v556
    %1253 = vmatmul.mubr.bf16.gmra.mrb[0].mxu0 %v555
    %v1254 = vpop.f32.mrb[0].mxu0
    %v1255 = vadd.f32 %v1158, %v1254
    %v1256 = vpop.f32.mrb[0].mxu0
    %v1257 = vpop.f32.mrb[0].mxu0
    %v1258 = vadd.f32 %v1161, %v1257
    %v1259 = vpop.f32.mrb[0].mxu0
    %1260 = vmatprep.mubr.bf16.mxu0 %v565
    %1261 = vmatmul.mubr.bf16.gmra.mrb[0].mxu0 %v564
    %v1262 = vpop.f32.mrb[0].mxu0
    %v1263 = vadd.f32 %v1166, %v1262
    %v1264 = vpop.f32.mrb[0].mxu0
    %v1265 = vpop.f32.mrb[0].mxu0
    %v1266 = vadd.f32 %v1169, %v1265
    %v1267 = vpop.f32.mrb[0].mxu0
    %1268 = vdwg.mxu0
    %1269 = vmatprep.subr.bf16.mxu0 0
    %1270 = vmatpush1.bf16.msra.mxu0 %v963
    %1271 = vmatprep.subr.bf16.mxu0 0
    %1272 = vmatpush1.bf16.msra.mxu0 %v964
    %1273 = vmatprep.subr.bf16.mxu0 0
    %1274 = vmatpush1.bf16.msra.mxu0 %v965
    %1275 = vmatprep.subr.bf16.mxu0 0
    %1276 = vmatpush1.bf16.msra.mxu0 %v966
    %1277 = vmatprep.subr.bf16.mxu0 0
    %1278 = vmatpush1.bf16.msra.mxu0 %v967
    %1279 = vmatprep.subr.bf16.mxu0 0
    %1280 = vmatpush1.bf16.msra.mxu0 %v968
    %1281 = vmatprep.subr.bf16.mxu0 0
    %1282 = vmatpush1.bf16.msra.mxu0 %v969
    %1283 = vmatprep.subr.bf16.mxu0 0
    %1284 = vmatpush1.bf16.msra.mxu0 %v970
    %1285 = vmatprep.subr.bf16.mxu0 0
    %1286 = vmatpush1.bf16.msra.mxu0 %v971
    %1287 = vmatprep.subr.bf16.mxu0 0
    %1288 = vmatpush1.bf16.msra.mxu0 %v972
    %1289 = vmatprep.subr.bf16.mxu0 0
    %1290 = vmatpush1.bf16.msra.mxu0 %v973
    %1291 = vmatprep.subr.bf16.mxu0 0
    %1292 = vmatpush1.bf16.msra.mxu0 %v974
    %1293 = vmatprep.subr.bf16.mxu0 0
    %1294 = vmatpush1.bf16.msra.mxu0 %v975
    %1295 = vmatprep.subr.bf16.mxu0 0
    %1296 = vmatpush1.bf16.msra.mxu0 %v976
    %1297 = vmatprep.subr.bf16.mxu0 0
    %1298 = vmatpush1.bf16.msra.mxu0 %v977
    %1299 = vmatprep.subr.bf16.mxu0 0
    %1300 = vmatpush1.bf16.msra.mxu0 %v978
    %1301 = vmatprep.mubr.bf16.mxu0 %v504
    %1302 = vmatmul.mubr.bf16.gmra.mrb[0].mxu0 %v503
    %v1303 = vpop.f32.mrb[0].mxu0
    %v1304 = vadd.f32 %v1207, %v1303
    %v1305 = vpop.f32.mrb[0].mxu0
    %v1306 = vpop.f32.mrb[0].mxu0
    %v1307 = vadd.f32 %v1210, %v1306
    %v1308 = vpop.f32.mrb[0].mxu0
    %1309 = vmatprep.mubr.bf16.mxu0 %v513
    %1310 = vmatmul.mubr.bf16.gmra.mrb[0].mxu0 %v512
    %v1311 = vpop.f32.mrb[0].mxu0
    %v1312 = vadd.f32 %v1215, %v1311
    %v1313 = vpop.f32.mrb[0].mxu0
    %v1314 = vpop.f32.mrb[0].mxu0
    %v1315 = vadd.f32 %v1218, %v1314
    %v1316 = vpop.f32.mrb[0].mxu0
    %1317 = vmatprep.mubr.bf16.mxu0 %v522
    %1318 = vmatmul.mubr.bf16.gmra.mrb[0].mxu0 %v521
    %v1319 = vpop.f32.mrb[0].mxu0
    %v1320 = vadd.f32 %v1223, %v1319
    %v1321 = vpop.f32.mrb[0].mxu0
    %v1322 = vpop.f32.mrb[0].mxu0
    %v1323 = vadd.f32 %v1226, %v1322
    %v1324 = vpop.f32.mrb[0].mxu0
    %1325 = vmatprep.mubr.bf16.mxu0 %v531
    %1326 = vmatmul.mubr.bf16.gmra.mrb[0].mxu0 %v530
    %v1327 = vpop.f32.mrb[0].mxu0
    %v1328 = vadd.f32 %v1231, %v1327
    %v1329 = vpop.f32.mrb[0].mxu0
    %v1330 = vpop.f32.mrb[0].mxu0
    %v1331 = vadd.f32 %v1234, %v1330
    %v1332 = vpop.f32.mrb[0].mxu0
    %1333 = vmatprep.mubr.bf16.mxu0 %v540
    %1334 = vmatmul.mubr.bf16.gmra.mrb[0].mxu0 %v539
    %v1335 = vpop.f32.mrb[0].mxu0
    %v1336 = vadd.f32 %v1239, %v1335
    %v1337 = vpop.f32.mrb[0].mxu0
    %v1338 = vpop.f32.mrb[0].mxu0
    %v1339 = vadd.f32 %v1242, %v1338
    %v1340 = vpop.f32.mrb[0].mxu0
    %1341 = vmatprep.mubr.bf16.mxu0 %v549
    %1342 = vmatmul.mubr.bf16.gmra.mrb[0].mxu0 %v548
    %v1343 = vpop.f32.mrb[0].mxu0
    %v1344 = vadd.f32 %v1247, %v1343
    %v1345 = vpop.f32.mrb[0].mxu0
    %v1346 = vpop.f32.mrb[0].mxu0
    %v1347 = vadd.f32 %v1250, %v1346
    %v1348 = vpop.f32.mrb[0].mxu0
    %1349 = vmatprep.mubr.bf16.mxu0 %v558
    %1350 = vmatmul.mubr.bf16.gmra.mrb[0].mxu0 %v557
    %v1351 = vpop.f32.mrb[0].mxu0
    %v1352 = vadd.f32 %v1255, %v1351
    %v1353 = vpop.f32.mrb[0].mxu0
    %v1354 = vpop.f32.mrb[0].mxu0
    %v1355 = vadd.f32 %v1258, %v1354
    %v1356 = vpop.f32.mrb[0].mxu0
    %1357 = vmatprep.mubr.bf16.mxu0 %v567
    %1358 = vmatmul.mubr.bf16.gmra.mrb[0].mxu0 %v566
    %v1359 = vpop.f32.mrb[0].mxu0
    %v1360 = vadd.f32 %v1263, %v1359
    %v1361 = vpop.f32.mrb[0].mxu0
    %v1362 = vpop.f32.mrb[0].mxu0
    %v1363 = vadd.f32 %v1266, %v1362
    %v1364 = vpop.f32.mrb[0].mxu0
    %1365 = vdwg.mxu0
    %1366 = vmatprep.subr.bf16.mxu0 0
    %1367 = vmatpush1.bf16.msra.mxu0 %v979
    %1368 = vmatprep.subr.bf16.mxu0 0
    %1369 = vmatpush1.bf16.msra.mxu0 %v980
    %1370 = vmatprep.subr.bf16.mxu0 0
    %1371 = vmatpush1.bf16.msra.mxu0 %v981
    %1372 = vmatprep.subr.bf16.mxu0 0
    %1373 = vmatpush1.bf16.msra.mxu0 %v982
    %1374 = vmatprep.subr.bf16.mxu0 0
    %1375 = vmatpush1.bf16.msra.mxu0 %v983
    %1376 = vmatprep.subr.bf16.mxu0 0
    %1377 = vmatpush1.bf16.msra.mxu0 %v984
    %1378 = vmatprep.subr.bf16.mxu0 0
    %1379 = vmatpush1.bf16.msra.mxu0 %v985
    %1380 = vmatprep.subr.bf16.mxu0 0
    %1381 = vmatpush1.bf16.msra.mxu0 %v986
    %1382 = vmatprep.subr.bf16.mxu0 0
    %1383 = vmatpush1.bf16.msra.mxu0 %v987
    %1384 = vmatprep.subr.bf16.mxu0 0
    %1385 = vmatpush1.bf16.msra.mxu0 %v988
    %1386 = vmatprep.subr.bf16.mxu0 0
    %1387 = vmatpush1.bf16.msra.mxu0 %v989
    %1388 = vmatprep.subr.bf16.mxu0 0
    %1389 = vmatpush1.bf16.msra.mxu0 %v990
    %1390 = vmatprep.subr.bf16.mxu0 0
    %1391 = vmatpush1.bf16.msra.mxu0 %v991
    %1392 = vmatprep.subr.bf16.mxu0 0
    %1393 = vmatpush1.bf16.msra.mxu0 %v992
    %1394 = vmatprep.subr.bf16.mxu0 0
    %1395 = vmatpush1.bf16.msra.mxu0 %v993
    %1396 = vmatprep.subr.bf16.mxu0 0
    %1397 = vmatpush1.bf16.msra.mxu0 %v994
    %1398 = vmatprep.mubr.bf16.mxu0 %v506
    %1399 = vmatmul.mubr.bf16.gmra.mrb[0].mxu0 %v505
    %v1400 = vpop.f32.mrb[0].mxu0
    %v1401 = vadd.f32 %v1304, %v1400
    %v1402 = vpop.f32.mrb[0].mxu0
    %v1403 = vpop.f32.mrb[0].mxu0
    %v1404 = vadd.f32 %v1307, %v1403
    %v1405 = vpop.f32.mrb[0].mxu0
    %1406 = vmatprep.mubr.bf16.mxu0 %v515
    %1407 = vmatmul.mubr.bf16.gmra.mrb[0].mxu0 %v514
    %v1408 = vpop.f32.mrb[0].mxu0
    %v1409 = vadd.f32 %v1312, %v1408
    %v1410 = vpop.f32.mrb[0].mxu0
    %v1411 = vpop.f32.mrb[0].mxu0
    %v1412 = vadd.f32 %v1315, %v1411
    %v1413 = vpop.f32.mrb[0].mxu0
    %1414 = vmatprep.mubr.bf16.mxu0 %v524
    %1415 = vmatmul.mubr.bf16.gmra.mrb[0].mxu0 %v523
    %v1416 = vpop.f32.mrb[0].mxu0
    %v1417 = vadd.f32 %v1320, %v1416
    %v1418 = vpop.f32.mrb[0].mxu0
    %v1419 = vpop.f32.mrb[0].mxu0
    %v1420 = vadd.f32 %v1323, %v1419
    %v1421 = vpop.f32.mrb[0].mxu0
    %1422 = vmatprep.mubr.bf16.mxu0 %v533
    %1423 = vmatmul.mubr.bf16.gmra.mrb[0].mxu0 %v532
    %v1424 = vpop.f32.mrb[0].mxu0
    %v1425 = vadd.f32 %v1328, %v1424
    %v1426 = vpop.f32.mrb[0].mxu0
    %v1427 = vpop.f32.mrb[0].mxu0
    %v1428 = vadd.f32 %v1331, %v1427
    %v1429 = vpop.f32.mrb[0].mxu0
    %1430 = vmatprep.mubr.bf16.mxu0 %v542
    %1431 = vmatmul.mubr.bf16.gmra.mrb[0].mxu0 %v541
    %v1432 = vpop.f32.mrb[0].mxu0
    %v1433 = vadd.f32 %v1336, %v1432
    %v1434 = vpop.f32.mrb[0].mxu0
    %v1435 = vpop.f32.mrb[0].mxu0
    %v1436 = vadd.f32 %v1339, %v1435
    %v1437 = vpop.f32.mrb[0].mxu0
    %1438 = vmatprep.mubr.bf16.mxu0 %v551
    %1439 = vmatmul.mubr.bf16.gmra.mrb[0].mxu0 %v550
    %v1440 = vpop.f32.mrb[0].mxu0
    %v1441 = vadd.f32 %v1344, %v1440
    %v1442 = vpop.f32.mrb[0].mxu0
    %v1443 = vpop.f32.mrb[0].mxu0
    %v1444 = vadd.f32 %v1347, %v1443
    %v1445 = vpop.f32.mrb[0].mxu0
    %1446 = vmatprep.mubr.bf16.mxu0 %v560
    %1447 = vmatmul.mubr.bf16.gmra.mrb[0].mxu0 %v559
    %v1448 = vpop.f32.mrb[0].mxu0
    %v1449 = vadd.f32 %v1352, %v1448
    %v1450 = vpop.f32.mrb[0].mxu0
    %v1451 = vpop.f32.mrb[0].mxu0
    %v1452 = vadd.f32 %v1355, %v1451
    %v1453 = vpop.f32.mrb[0].mxu0
    %1454 = vmatprep.mubr.bf16.mxu0 %v569
    %1455 = vmatmul.mubr.bf16.gmra.mrb[0].mxu0 %v568
    %v1456 = vpop.f32.mrb[0].mxu0
    %v1457 = vadd.f32 %v1360, %v1456
    %v1458 = vpop.f32.mrb[0].mxu0
    %v1459 = vpop.f32.mrb[0].mxu0
    %v1460 = vadd.f32 %v1363, %v1459
    %v1461 = vpop.f32.mrb[0].mxu0
    %1462 = vdwg.mxu0
    %1463 = vmatprep.subr.bf16.mxu0 0
    %1464 = vmatpush1.bf16.msra.mxu0 %v995
    %1465 = vmatprep.subr.bf16.mxu0 0
    %1466 = vmatpush1.bf16.msra.mxu0 %v996
    %1467 = vmatprep.subr.bf16.mxu0 0
    %1468 = vmatpush1.bf16.msra.mxu0 %v997
    %1469 = vmatprep.subr.bf16.mxu0 0
    %1470 = vmatpush1.bf16.msra.mxu0 %v998
    %1471 = vmatprep.subr.bf16.mxu0 0
    %1472 = vmatpush1.bf16.msra.mxu0 %v999
    %1473 = vmatprep.subr.bf16.mxu0 0
    %1474 = vmatpush1.bf16.msra.mxu0 %v1000
    %1475 = vmatprep.subr.bf16.mxu0 0
    %1476 = vmatpush1.bf16.msra.mxu0 %v1001
    %1477 = vmatprep.subr.bf16.mxu0 0
    %1478 = vmatpush1.bf16.msra.mxu0 %v1002
    %1479 = vmatprep.subr.bf16.mxu0 0
    %1480 = vmatpush1.bf16.msra.mxu0 0
    %1481 = vmatprep.subr.bf16.mxu0 0
    %1482 = vmatpush1.bf16.msra.mxu0 0
    %1483 = vmatprep.subr.bf16.mxu0 0
    %1484 = vmatpush1.bf16.msra.mxu0 0
    %1485 = vmatprep.subr.bf16.mxu0 0
    %1486 = vmatpush1.bf16.msra.mxu0 0
    %1487 = vmatprep.subr.bf16.mxu0 0
    %1488 = vmatpush1.bf16.msra.mxu0 0
    %1489 = vmatprep.subr.bf16.mxu0 0
    %1490 = vmatpush1.bf16.msra.mxu0 0
    %1491 = vmatprep.subr.bf16.mxu0 0
    %1492 = vmatpush1.bf16.msra.mxu0 0
    %1493 = vmatprep.subr.bf16.mxu0 0
    %1494 = vmatpush1.bf16.msra.mxu0 0
    %1495 = vmatprep.mubr.bf16.mxu0 0
    %1496 = vmatmul.mubr.bf16.gmra.mrb[0].mxu0 %v507
    %v1497 = vpop.f32.mrb[0].mxu0
    %v1498 = vadd.f32 %v1401, %v1497
    %v1499 = vpop.f32.mrb[0].mxu0
    %v1500 = vpop.f32.mrb[0].mxu0
    %v1501 = vadd.f32 %v1404, %v1500
    %v1502 = vpop.f32.mrb[0].mxu0
    %1503 = vmatprep.mubr.bf16.mxu0 0
    %1504 = vmatmul.mubr.bf16.gmra.mrb[0].mxu0 %v516
    %v1505 = vpop.f32.mrb[0].mxu0
    %v1506 = vadd.f32 %v1409, %v1505
    %v1507 = vpop.f32.mrb[0].mxu0
    %v1508 = vpop.f32.mrb[0].mxu0
    %v1509 = vadd.f32 %v1412, %v1508
    %v1510 = vpop.f32.mrb[0].mxu0
    %1511 = vmatprep.mubr.bf16.mxu0 0
    %1512 = vmatmul.mubr.bf16.gmra.mrb[0].mxu0 %v525
    %v1513 = vpop.f32.mrb[0].mxu0
    %v1514 = vadd.f32 %v1417, %v1513
    %v1515 = vpop.f32.mrb[0].mxu0
    %v1516 = vpop.f32.mrb[0].mxu0
    %v1517 = vadd.f32 %v1420, %v1516
    %v1518 = vpop.f32.mrb[0].mxu0
    %1519 = vmatprep.mubr.bf16.mxu0 0
    %1520 = vmatmul.mubr.bf16.gmra.mrb[0].mxu0 %v534
    %v1521 = vpop.f32.mrb[0].mxu0
    %v1522 = vadd.f32 %v1425, %v1521
    %v1523 = vpop.f32.mrb[0].mxu0
    %v1524 = vpop.f32.mrb[0].mxu0
    %v1525 = vadd.f32 %v1428, %v1524
    %v1526 = vpop.f32.mrb[0].mxu0
    %1527 = vmatprep.mubr.bf16.mxu0 0
    %1528 = vmatmul.mubr.bf16.gmra.mrb[0].mxu0 %v543
    %v1529 = vpop.f32.mrb[0].mxu0
    %v1530 = vadd.f32 %v1433, %v1529
    %v1531 = vpop.f32.mrb[0].mxu0
    %v1532 = vpop.f32.mrb[0].mxu0
    %v1533 = vadd.f32 %v1436, %v1532
    %v1534 = vpop.f32.mrb[0].mxu0
    %1535 = vmatprep.mubr.bf16.mxu0 0
    %1536 = vmatmul.mubr.bf16.gmra.mrb[0].mxu0 %v552
    %v1537 = vpop.f32.mrb[0].mxu0
    %v1538 = vadd.f32 %v1441, %v1537
    %v1539 = vpop.f32.mrb[0].mxu0
    %v1540 = vpop.f32.mrb[0].mxu0
    %v1541 = vadd.f32 %v1444, %v1540
    %v1542 = vpop.f32.mrb[0].mxu0
    %1543 = vmatprep.mubr.bf16.mxu0 0
    %1544 = vmatmul.mubr.bf16.gmra.mrb[0].mxu0 %v561
    %v1545 = vpop.f32.mrb[0].mxu0
    %v1546 = vadd.f32 %v1449, %v1545
    %v1547 = vpop.f32.mrb[0].mxu0
    %v1548 = vpop.f32.mrb[0].mxu0
    %v1549 = vadd.f32 %v1452, %v1548
    %v1550 = vpop.f32.mrb[0].mxu0
    %1551 = vmatprep.mubr.bf16.mxu0 0
    %1552 = vmatmul.mubr.bf16.gmra.mrb[0].mxu0 %v570
    %v1553 = vpop.f32.mrb[0].mxu0
    %v1554 = vadd.f32 %v1457, %v1553
    %v1555 = vpop.f32.mrb[0].mxu0
    %v1556 = vpop.f32.mrb[0].mxu0
    %v1557 = vadd.f32 %v1460, %v1556
    %v1558 = vpop.f32.mrb[0].mxu0
    %1559 = vdwg.mxu0
    %v1560 = vmax.f32 %v1498, 0.0
    %v1561 = vmax.f32 %v1501, 0.0
    %v1562 = vmax.f32 %v1506, 0.0
    %v1563 = vmax.f32 %v1509, 0.0
    %v1564 = vmax.f32 %v1514, 0.0
    %v1565 = vmax.f32 %v1517, 0.0
    %v1566 = vmax.f32 %v1522, 0.0
    %v1567 = vmax.f32 %v1525, 0.0
    %v1568 = vmax.f32 %v1530, 0.0
    %v1569 = vmax.f32 %v1533, 0.0
    %v1570 = vmax.f32 %v1538, 0.0
    %v1571 = vmax.f32 %v1541, 0.0
    %v1572 = vmax.f32 %v1546, 0.0
    %v1573 = vmax.f32 %v1549, 0.0
    %v1574 = vmax.f32 %v1554, 0.0
    %v1575 = vmax.f32 %v1557, 0.0
    %v1576 = vpack.c.bf16 %v1561, %v1560
    %v1577 = vpack.c.bf16 %v1563, %v1562
    %v1578 = vpack.c.bf16 %v1565, %v1564
    %v1579 = vpack.c.bf16 %v1567, %v1566
    %v1580 = vpack.c.bf16 %v1569, %v1568
    %v1581 = vpack.c.bf16 %v1571, %v1570
    %v1582 = vpack.c.bf16 %v1573, %v1572
    %v1583 = vpack.c.bf16 %v1575, %v1574
    %v1592 = vunpack.c.l.b16 %v1576
    %v1593 = vunpack.c.h.b16 %v1576
    %v1594 = vunpack.c.l.b16 %v1577
    %v1595 = vunpack.c.h.b16 %v1577
    %v1596 = vunpack.c.l.b16 %v1578
    %v1597 = vunpack.c.h.b16 %v1578
    %v1598 = vunpack.c.l.b16 %v1579
    %v1599 = vunpack.c.h.b16 %v1579
    %v1600 = vunpack.c.l.b16 %v1580
    %v1601 = vunpack.c.h.b16 %v1580
    %v1602 = vunpack.c.l.b16 %v1581
    %v1603 = vunpack.c.h.b16 %v1581
    %v1604 = vunpack.c.l.b16 %v1582
    %v1605 = vunpack.c.h.b16 %v1582
    %v1606 = vunpack.c.l.b16 %v1583
    %v1607 = vunpack.c.h.b16 %v1583
    %v1608 = vpack.c.b16 %v1592, %v1592
    %v1609 = vpack.c.b16 %v1593, %v1593
    %v1610 = vpack.c.b16 %v1594, %v1594
    %v1611 = vpack.c.b16 %v1595, %v1595
    %v1612 = vpack.c.b16 %v1596, %v1596
    %v1613 = vpack.c.b16 %v1597, %v1597
    %v1614 = vpack.c.b16 %v1598, %v1598
    %v1615 = vpack.c.b16 %v1599, %v1599
    %v1616 = vpack.c.b16 %v1600, %v1600
    %v1617 = vpack.c.b16 %v1601, %v1601
    %v1618 = vpack.c.b16 %v1602, %v1602
    %v1619 = vpack.c.b16 %v1603, %v1603
    %v1620 = vpack.c.b16 %v1604, %v1604
    %v1621 = vpack.c.b16 %v1605, %v1605
    %v1622 = vpack.c.b16 %v1606, %v1606
    %v1623 = vpack.c.b16 %v1607, %v1607
    %1640 = vst [vmem:[#allocation7] sm:$0xf] %v1608
    %1641 = vst [vmem:[#allocation7 + $0x4] sm:$0xf] %v1609
    %1642 = vst [vmem:[#allocation7 + $0x8] sm:$0xf] %v1610
    %1643 = vst [vmem:[#allocation7 + $0xc] sm:$0xf] %v1611
    %1644 = vst [vmem:[#allocation7 + $0x10] sm:$0xf] %v1612
    %1645 = vst [vmem:[#allocation7 + $0x14] sm:$0xf] %v1613
    %1646 = vst [vmem:[#allocation7 + $0x18] sm:$0xf] %v1614
    %1647 = vst [vmem:[#allocation7 + $0x1c] sm:$0xf] %v1615
    %1648 = vst [vmem:[#allocation7 + $0x20] sm:$0xf] %v1616
    %1649 = vst [vmem:[#allocation7 + $0x24] sm:$0xf] %v1617
    %1650 = vst [vmem:[#allocation7 + $0x28] sm:$0xf] %v1618
    %1651 = vst [vmem:[#allocation7 + $0x2c] sm:$0xf] %v1619
    %1652 = vst [vmem:[#allocation7 + $0x30] sm:$0xf] %v1620
    %1653 = vst [vmem:[#allocation7 + $0x34] sm:$0xf] %v1621
    %1654 = vst [vmem:[#allocation7 + $0x38] sm:$0xf] %v1622
    %1655 = vst [vmem:[#allocation7 + $0x3c] sm:$0xf] %v1623
    // Predicated region
    $region22: #{tpu_custom_call.1} parent=1 // pred_check
      _
    $region23: #{tpu_custom_call.1} parent=1 // pred_check_branch
      %1657 = sbr.rel (0) target = $region25
    $region24: #{tpu_custom_call.1} parent=1 // pred_region
      %s1659 = ssub.s32 1024, 1024
      %1660 = vsyncadd [#allocation4], %s1659
      %s1661 = sshll.u32 [#allocation7], 4
      %s1662 = int_to_ptr.vmem [resolvable:$true] %s1661
      %1667 = dma.vmem_to_hbm [thread:$0]  %s1662, 1024, %s3, [#allocation4], 64, 64, 4
    $region25: #{tpu_custom_call.1} parent=1 // pred_fallthru
      _
    // Predicated region
    $region26: #{tpu_custom_call.1} parent=1 // pred_check
      _
    $region27: #{tpu_custom_call.1} parent=1 // pred_check_branch
      %1669 = sbr.rel (0) target = $region29
    $region28: #{tpu_custom_call.1} parent=1 // pred_region
      %1670 = dma.done [#allocation4], 1024
    $region29: #{tpu_custom_call.1} parent=1 // pred_fallthru
      _
    %1671 = vsyncpa [#allocation3], 1
    %1672 = vsyncpa [#allocation6], 1
    %1673 = vsyncpa [#allocation4], 1

</llo_original>
